<compile_context>
chip_gen: v6e
topology: v6e:2x2x1
jax: 0.10.0
libtpu: 0.0.40
codegen_flags: <defaults>
</compile_context>

<pallas_src>
import jax
import jax.numpy as jnp
import numpy as np
from jax.experimental import pallas as pl
from jax.experimental.pallas import tpu as pltpu


def _gru_encoder_kernel(xt_ref,     # (T, Bp, F)  time-major input, ORIGINAL time order
                        wih_ref,    # (3, F, H)   input->hidden weights, gate-stacked [r, z, n]
                        whh_ref,    # (3, H, H)   hidden->hidden weights, gate-stacked
                        bih_ref,    # (3, 1, H)
                        bhh_ref,    # (3, 1, H)
                        wl_ref,     # (H, 2L)     hid2lat weights (pre-transposed)
                        bl_ref,     # (1, 2L)
                        out_ref):   # (Bp, 2L)    fused output: [mean | logvar]
    T, Bp, F = xt_ref.shape
    H = whh_ref.shape[-1]

    # ---- hoisted input projection: one big (T*Bp, F) matmul per gate, done once ----
    # (T, Bp, F) -> (T*Bp, F) merges leading dims only; Bp is a sublane multiple, so this
    # reshape (and the inverse one below) is layout-free.
    x2d = xt_ref[...].reshape(T * Bp, F)
    # Fold b_hr / b_hz into the r/z pre-activations (legal for PyTorch GRU); b_hn must stay
    # inside the r * (...) term, so it is applied per step.
    gi_r = (jnp.dot(x2d, wih_ref[0], preferred_element_type=jnp.float32)
            + bih_ref[0] + bhh_ref[0]).reshape(T, Bp, H)
    gi_z = (jnp.dot(x2d, wih_ref[1], preferred_element_type=jnp.float32)
            + bih_ref[1] + bhh_ref[1]).reshape(T, Bp, H)
    gi_n = (jnp.dot(x2d, wih_ref[2], preferred_element_type=jnp.float32)
            + bih_ref[2]).reshape(T, Bp, H)

    w_hr = whh_ref[0]
    w_hz = whh_ref[1]
    w_hn = whh_ref[2]
    b_hn = bhh_ref[2]

    # ---- serial recurrence over reversed time, h carried in vregs ----
    # T is a static trace-time constant, so this Python loop IS the fully-unrolled recurrence
    # (equivalent to lax.fori_loop(..., unroll=True)); every gi_*[t] index is a static
    # leading-axis tile pick (no dynamic slicing). For long sequences this would be chunked
    # over a grid axis instead.
    h = jnp.zeros((Bp, H), jnp.float32)
    for s in range(T):
        t = T - 1 - s   # reversal folded in: process original steps T-1, ..., 0
        r = jax.nn.sigmoid(gi_r[t] + jnp.dot(h, w_hr, preferred_element_type=jnp.float32))
        z = jax.nn.sigmoid(gi_z[t] + jnp.dot(h, w_hz, preferred_element_type=jnp.float32))
        n = jnp.tanh(gi_n[t] + r * (jnp.dot(h, w_hn, preferred_element_type=jnp.float32) + b_hn))
        h = (1.0 - z) * n + z * h

    # ---- hid2lat: single lane-contiguous (Bp, 2L) store ----
    out_ref[...] = (jnp.dot(h, wl_ref[...], preferred_element_type=jnp.float32)
                    + bl_ref[...])


def rnn_encoder_forward(x, t, params, latent_dim):
    """x: (B, T, input_dim), t: (B, T, 1). Returns (z0_mean, z0_log_var), each (B, latent_dim)."""
    B, T, input_dim = x.shape
    F_in = input_dim + 1
    H = params["w_hh_g"].shape[-1]
    L = latent_dim
    Bp = ((B + 7) // 8) * 8   # pad batch to a sublane multiple; padded rows are row-independent
                              # and sliced away below.

    # --- glue (matches the PyTorch forward preprocessing) ---
    # Time reversal is folded into the kernel loop, so no flip pass here. The time-major
    # swapaxes fuses with the concat/pad copy that has to materialize xt anyway.
    x_tm = jnp.swapaxes(x, 0, 1)                       # (T, B, D)
    t_tm = jnp.swapaxes(t, 0, 1)                       # (T, B, 1)
    t_diff = jnp.concatenate([jnp.zeros_like(t_tm[:1]), t_tm[1:] - t_tm[:-1]], axis=0)
    xt = jnp.concatenate([x_tm, t_diff], axis=-1)      # (T, B, F)
    xt = jnp.pad(xt, ((0, 0), (0, Bp - B), (0, 0)))    # (T, Bp, F)

    flops = (2 * T * Bp * F_in * 3 * H          # hoisted input projection (3 gates)
             + 2 * T * Bp * H * 3 * H           # per-step hidden-to-hidden gemms
             + 2 * Bp * H * 2 * L)              # hid2lat
    transcendentals = 3 * T * Bp * H            # 2 sigmoids + 1 tanh per step
    bytes_accessed = 4 * (T * Bp * F_in + 3 * F_in * H + 3 * H * H + 6 * H
                          + H * 2 * L + 2 * L + Bp * 2 * L)

    z0 = pl.pallas_call(
        _gru_encoder_kernel,
        out_shape=jax.ShapeDtypeStruct((Bp, 2 * L), jnp.float32),
        cost_estimate=pl.CostEstimate(flops=flops,
                                      transcendentals=transcendentals,
                                      bytes_accessed=bytes_accessed),
    )(xt,
      params["w_ih_g"], params["w_hh_g"],
      params["b_ih_g"], params["b_hh_g"],
      params["w_l_T"], params["b_l"])

    return z0[:B, :L], z0[:B, L:]


def make_params(key, input_dim, hidden_dim, latent_dim):
    """Deterministic synthetic parameters matching nn.GRU / nn.Linear shapes,
    repacked into the gate-stacked, pre-transposed kernel layout."""
    F_in = input_dim + 1
    H = hidden_dim
    k = 1.0 / np.sqrt(H)
    ks = jax.random.split(key, 6)
    # PyTorch layout: weight_ih (3H, F), weight_hh (3H, H), hid2lat.weight (2L, H);
    # stacked gate order along the 3H axis is [r; z; n].
    w_ih = jax.random.uniform(ks[0], (3 * H, F_in), jnp.float32, -k, k)
    w_hh = jax.random.uniform(ks[1], (3 * H, H), jnp.float32, -k, k)
    b_ih = jax.random.uniform(ks[2], (3 * H,), jnp.float32, -k, k)
    b_hh = jax.random.uniform(ks[3], (3 * H,), jnp.float32, -k, k)
    w_l = jax.random.uniform(ks[4], (2 * latent_dim, H), jnp.float32, -k, k)
    b_l = jax.random.uniform(ks[5], (2 * latent_dim,), jnp.float32, -k, k)
    # Gate-stacked + pre-transposed so the kernel never lane-slices at H / 2H.
    w_ih_g = jnp.transpose(w_ih.reshape(3, H, F_in), (0, 2, 1))   # (3, F, H)
    w_hh_g = jnp.transpose(w_hh.reshape(3, H, H), (0, 2, 1))      # (3, H, H)
    return {
        "w_ih_g": w_ih_g,
        "w_hh_g": w_hh_g,
        "b_ih_g": b_ih.reshape(3, 1, H),
        "b_hh_g": b_hh.reshape(3, 1, H),
        "w_l_T": jnp.asarray(w_l.T),            # (H, 2L)
        "b_l": jnp.asarray(b_l)[None, :],       # (1, 2L)
    }


def _reference_forward(x, t, params, latent_dim):
    """Pure-JAX reference of the PyTorch forward (for correctness checking)."""
    t_diff = jnp.concatenate([jnp.zeros_like(t[:, :1]), t[:, 1:] - t[:, :-1]], axis=1)
    xt = jnp.concatenate([x, t_diff], axis=-1)
    xt_rev = xt[:, ::-1, :]
    B = x.shape[0]
    H = params["w_hh_g"].shape[-1]
    w_ir, w_iz, w_in = params["w_ih_g"][0], params["w_ih_g"][1], params["w_ih_g"][2]
    w_hr, w_hz, w_hn = params["w_hh_g"][0], params["w_hh_g"][1], params["w_hh_g"][2]
    b_ir, b_iz, b_in = params["b_ih_g"][0], params["b_ih_g"][1], params["b_ih_g"][2]
    b_hr, b_hz, b_hn = params["b_hh_g"][0], params["b_hh_g"][1], params["b_hh_g"][2]

    def step(h, x_t):
        r = jax.nn.sigmoid(x_t @ w_ir + b_ir + h @ w_hr + b_hr)
        z = jax.nn.sigmoid(x_t @ w_iz + b_iz + h @ w_hz + b_hz)
        n = jnp.tanh(x_t @ w_in + b_in + r * (h @ w_hn + b_hn))
        return (1.0 - z) * n + z * h, None

    h, _ = jax.lax.scan(step, jnp.zeros((B, H), jnp.float32),
                        jnp.transpose(xt_rev, (1, 0, 2)))
    z0 = h @ params["w_l_T"] + params["b_l"]
    return z0[:, :latent_dim], z0[:, latent_dim:]


if __name__ == "__main__":
    input_dim, hidden_dim, latent_dim = 4, 32, 8
    B, T = 2, 8

    key = jax.random.PRNGKey(0)
    kx, kt, kp = jax.random.split(key, 3)
    x = jax.random.normal(kx, (B, T, input_dim), jnp.float32)
    # strictly increasing-ish timestamps, shape (B, T, 1)
    t = jnp.cumsum(jax.random.uniform(kt, (B, T, 1), jnp.float32, 0.1, 1.0), axis=1)

    params = make_params(kp, input_dim, hidden_dim, latent_dim)

    z0_mean, z0_log_var = rnn_encoder_forward(x, t, params, latent_dim)
    jax.block_until_ready((z0_mean, z0_log_var))

    ref_mean, ref_logvar = _reference_forward(x, t, params, latent_dim)
    np.testing.assert_allclose(np.asarray(z0_mean), np.asarray(ref_mean), rtol=1e-5, atol=1e-5)
    np.testing.assert_allclose(np.asarray(z0_log_var), np.asarray(ref_logvar), rtol=1e-5, atol=1e-5)

    print("KERNEL_OK")
</pallas_src>

<mosaic_0001>
module attributes {stable_mosaic.version = 11 : i64} {
  func.func @_gru_encoder_kernel(%arg0: memref<8x8x5xf32, #tpu.memory_space<vmem>>, %arg1: memref<3x5x32xf32, #tpu.memory_space<vmem>>, %arg2: memref<3x32x32xf32, #tpu.memory_space<vmem>>, %arg3: memref<3x1x32xf32, #tpu.memory_space<vmem>>, %arg4: memref<3x1x32xf32, #tpu.memory_space<vmem>>, %arg5: memref<32x16xf32, #tpu.memory_space<vmem>>, %arg6: memref<1x16xf32, #tpu.memory_space<vmem>>, %arg7: memref<8x16xf32, #tpu.memory_space<vmem>>) attributes {dimension_semantics = [], scalar_prefetch = 0 : i64, scratch_operands = 0 : i64, tpu.core_type = #tpu.core_type<tc>} {
    %c0 = arith.constant 0 : index
    %c0_0 = arith.constant 0 : index
    %c0_1 = arith.constant 0 : index
    %0 = vector.load %arg0[%c0, %c0_0, %c0_1] : memref<8x8x5xf32, #tpu.memory_space<vmem>>, vector<8x8x5xf32>
    %1 = vector.shape_cast %0 : vector<8x8x5xf32> to vector<64x5xf32>
    %c0_2 = arith.constant 0 : index
    %c0_3 = arith.constant 0 : index
    %c0_4 = arith.constant 0 : index
    %2 = vector.load %arg1[%c0_2, %c0_3, %c0_4] : memref<3x5x32xf32, #tpu.memory_space<vmem>>, vector<1x5x32xf32>
    %3 = vector.shape_cast %2 : vector<1x5x32xf32> to vector<5x32xf32>
    %cst = arith.constant dense<0.000000e+00> : vector<64x32xf32>
    %4 = tpu.matmul %1, %3, %cst {dimension_numbers = #tpu.dot_dimension_numbers<[1], [0], [0], [1], [0, 0, 1, 1], [], []>} : vector<64x5xf32>, vector<5x32xf32>, vector<64x32xf32> -> vector<64x32xf32>
    %c0_5 = arith.constant 0 : index
    %c0_6 = arith.constant 0 : index
    %c0_7 = arith.constant 0 : index
    %5 = vector.load %arg3[%c0_5, %c0_6, %c0_7] : memref<3x1x32xf32, #tpu.memory_space<vmem>>, vector<1x1x32xf32>
    %6 = vector.shape_cast %5 : vector<1x1x32xf32> to vector<1x32xf32>
    %7 = vector.broadcast %6 : vector<1x32xf32> to vector<64x32xf32>
    %8 = arith.addf %4, %7 : vector<64x32xf32>
    %c0_8 = arith.constant 0 : index
    %c0_9 = arith.constant 0 : index
    %c0_10 = arith.constant 0 : index
    %9 = vector.load %arg4[%c0_8, %c0_9, %c0_10] : memref<3x1x32xf32, #tpu.memory_space<vmem>>, vector<1x1x32xf32>
    %10 = vector.shape_cast %9 : vector<1x1x32xf32> to vector<1x32xf32>
    %11 = vector.broadcast %10 : vector<1x32xf32> to vector<64x32xf32>
    %12 = arith.addf %8, %11 : vector<64x32xf32>
    %13 = vector.shape_cast %12 : vector<64x32xf32> to vector<8x8x32xf32>
    %c1 = arith.constant 1 : index
    %c0_11 = arith.constant 0 : index
    %c0_12 = arith.constant 0 : index
    %14 = vector.load %arg1[%c1, %c0_11, %c0_12] : memref<3x5x32xf32, #tpu.memory_space<vmem>>, vector<1x5x32xf32>
    %15 = vector.shape_cast %14 : vector<1x5x32xf32> to vector<5x32xf32>
    %cst_13 = arith.constant dense<0.000000e+00> : vector<64x32xf32>
    %16 = tpu.matmul %1, %15, %cst_13 {dimension_numbers = #tpu.dot_dimension_numbers<[1], [0], [0], [1], [0, 0, 1, 1], [], []>} : vector<64x5xf32>, vector<5x32xf32>, vector<64x32xf32> -> vector<64x32xf32>
    %c1_14 = arith.constant 1 : index
    %c0_15 = arith.constant 0 : index
    %c0_16 = arith.constant 0 : index
    %17 = vector.load %arg3[%c1_14, %c0_15, %c0_16] : memref<3x1x32xf32, #tpu.memory_space<vmem>>, vector<1x1x32xf32>
    %18 = vector.shape_cast %17 : vector<1x1x32xf32> to vector<1x32xf32>
    %19 = vector.broadcast %18 : vector<1x32xf32> to vector<64x32xf32>
    %20 = arith.addf %16, %19 : vector<64x32xf32>
    %c1_17 = arith.constant 1 : index
    %c0_18 = arith.constant 0 : index
    %c0_19 = arith.constant 0 : index
    %21 = vector.load %arg4[%c1_17, %c0_18, %c0_19] : memref<3x1x32xf32, #tpu.memory_space<vmem>>, vector<1x1x32xf32>
    %22 = vector.shape_cast %21 : vector<1x1x32xf32> to vector<1x32xf32>
    %23 = vector.broadcast %22 : vector<1x32xf32> to vector<64x32xf32>
    %24 = arith.addf %20, %23 : vector<64x32xf32>
    %25 = vector.shape_cast %24 : vector<64x32xf32> to vector<8x8x32xf32>
    %c2 = arith.constant 2 : index
    %c0_20 = arith.constant 0 : index
    %c0_21 = arith.constant 0 : index
    %26 = vector.load %arg1[%c2, %c0_20, %c0_21] : memref<3x5x32xf32, #tpu.memory_space<vmem>>, vector<1x5x32xf32>
    %27 = vector.shape_cast %26 : vector<1x5x32xf32> to vector<5x32xf32>
    %cst_22 = arith.constant dense<0.000000e+00> : vector<64x32xf32>
    %28 = tpu.matmul %1, %27, %cst_22 {dimension_numbers = #tpu.dot_dimension_numbers<[1], [0], [0], [1], [0, 0, 1, 1], [], []>} : vector<64x5xf32>, vector<5x32xf32>, vector<64x32xf32> -> vector<64x32xf32>
    %c2_23 = arith.constant 2 : index
    %c0_24 = arith.constant 0 : index
    %c0_25 = arith.constant 0 : index
    %29 = vector.load %arg3[%c2_23, %c0_24, %c0_25] : memref<3x1x32xf32, #tpu.memory_space<vmem>>, vector<1x1x32xf32>
    %30 = vector.shape_cast %29 : vector<1x1x32xf32> to vector<1x32xf32>
    %31 = vector.broadcast %30 : vector<1x32xf32> to vector<64x32xf32>
    %32 = arith.addf %28, %31 : vector<64x32xf32>
    %33 = vector.shape_cast %32 : vector<64x32xf32> to vector<8x8x32xf32>
    %c0_26 = arith.constant 0 : index
    %c0_27 = arith.constant 0 : index
    %c0_28 = arith.constant 0 : index
    %34 = vector.load %arg2[%c0_26, %c0_27, %c0_28] : memref<3x32x32xf32, #tpu.memory_space<vmem>>, vector<1x32x32xf32>
    %35 = vector.shape_cast %34 : vector<1x32x32xf32> to vector<32x32xf32>
    %c1_29 = arith.constant 1 : index
    %c0_30 = arith.constant 0 : index
    %c0_31 = arith.constant 0 : index
    %36 = vector.load %arg2[%c1_29, %c0_30, %c0_31] : memref<3x32x32xf32, #tpu.memory_space<vmem>>, vector<1x32x32xf32>
    %37 = vector.shape_cast %36 : vector<1x32x32xf32> to vector<32x32xf32>
    %c2_32 = arith.constant 2 : index
    %c0_33 = arith.constant 0 : index
    %c0_34 = arith.constant 0 : index
    %38 = vector.load %arg2[%c2_32, %c0_33, %c0_34] : memref<3x32x32xf32, #tpu.memory_space<vmem>>, vector<1x32x32xf32>
    %39 = vector.shape_cast %38 : vector<1x32x32xf32> to vector<32x32xf32>
    %c2_35 = arith.constant 2 : index
    %c0_36 = arith.constant 0 : index
    %c0_37 = arith.constant 0 : index
    %40 = vector.load %arg4[%c2_35, %c0_36, %c0_37] : memref<3x1x32xf32, #tpu.memory_space<vmem>>, vector<1x1x32xf32>
    %41 = vector.shape_cast %40 : vector<1x1x32xf32> to vector<1x32xf32>
    %cst_38 = arith.constant 0.000000e+00 : f32
    %42 = vector.broadcast %cst_38 : f32 to vector<8x32xf32>
    %43 = vector.extract_strided_slice %13 {offsets = [7, 0, 0], sizes = [1, 8, 32], strides = [1, 1, 1]} : vector<8x8x32xf32> to vector<1x8x32xf32>
    %44 = vector.shape_cast %43 : vector<1x8x32xf32> to vector<8x32xf32>
    %cst_39 = arith.constant dense<0.000000e+00> : vector<8x32xf32>
    %45 = tpu.matmul %42, %35, %cst_39 {dimension_numbers = #tpu.dot_dimension_numbers<[1], [0], [0], [1], [0, 0, 1, 1], [], []>} : vector<8x32xf32>, vector<32x32xf32>, vector<8x32xf32> -> vector<8x32xf32>
    %46 = arith.addf %44, %45 : vector<8x32xf32>
    %47 = arith.negf %46 : vector<8x32xf32>
    %48 = math.exp %47 : vector<8x32xf32>
    %cst_40 = arith.constant 1.000000e+00 : f32
    %49 = vector.broadcast %cst_40 : f32 to vector<8x32xf32>
    %50 = arith.addf %49, %48 : vector<8x32xf32>
    %51 = arith.divf %49, %50 : vector<8x32xf32>
    %52 = vector.extract_strided_slice %25 {offsets = [7, 0, 0], sizes = [1, 8, 32], strides = [1, 1, 1]} : vector<8x8x32xf32> to vector<1x8x32xf32>
    %53 = vector.shape_cast %52 : vector<1x8x32xf32> to vector<8x32xf32>
    %cst_41 = arith.constant dense<0.000000e+00> : vector<8x32xf32>
    %54 = tpu.matmul %42, %37, %cst_41 {dimension_numbers = #tpu.dot_dimension_numbers<[1], [0], [0], [1], [0, 0, 1, 1], [], []>} : vector<8x32xf32>, vector<32x32xf32>, vector<8x32xf32> -> vector<8x32xf32>
    %55 = arith.addf %53, %54 : vector<8x32xf32>
    %56 = arith.negf %55 : vector<8x32xf32>
    %57 = math.exp %56 : vector<8x32xf32>
    %cst_42 = arith.constant 1.000000e+00 : f32
    %58 = vector.broadcast %cst_42 : f32 to vector<8x32xf32>
    %59 = arith.addf %58, %57 : vector<8x32xf32>
    %60 = arith.divf %58, %59 : vector<8x32xf32>
    %61 = vector.extract_strided_slice %33 {offsets = [7, 0, 0], sizes = [1, 8, 32], strides = [1, 1, 1]} : vector<8x8x32xf32> to vector<1x8x32xf32>
    %62 = vector.shape_cast %61 : vector<1x8x32xf32> to vector<8x32xf32>
    %cst_43 = arith.constant dense<0.000000e+00> : vector<8x32xf32>
    %63 = tpu.matmul %42, %39, %cst_43 {dimension_numbers = #tpu.dot_dimension_numbers<[1], [0], [0], [1], [0, 0, 1, 1], [], []>} : vector<8x32xf32>, vector<32x32xf32>, vector<8x32xf32> -> vector<8x32xf32>
    %64 = vector.broadcast %41 : vector<1x32xf32> to vector<8x32xf32>
    %65 = arith.addf %63, %64 : vector<8x32xf32>
    %66 = arith.mulf %51, %65 : vector<8x32xf32>
    %67 = arith.addf %62, %66 : vector<8x32xf32>
    %68 = math.tanh %67 : vector<8x32xf32>
    %cst_44 = arith.constant 1.000000e+00 : f32
    %69 = vector.broadcast %cst_44 : f32 to vector<8x32xf32>
    %70 = arith.subf %69, %60 : vector<8x32xf32>
    %71 = arith.mulf %70, %68 : vector<8x32xf32>
    %72 = arith.mulf %60, %42 : vector<8x32xf32>
    %73 = arith.addf %71, %72 : vector<8x32xf32>
    %74 = vector.extract_strided_slice %13 {offsets = [6, 0, 0], sizes = [1, 8, 32], strides = [1, 1, 1]} : vector<8x8x32xf32> to vector<1x8x32xf32>
    %75 = vector.shape_cast %74 : vector<1x8x32xf32> to vector<8x32xf32>
    %cst_45 = arith.constant dense<0.000000e+00> : vector<8x32xf32>
    %76 = tpu.matmul %73, %35, %cst_45 {dimension_numbers = #tpu.dot_dimension_numbers<[1], [0], [0], [1], [0, 0, 1, 1], [], []>} : vector<8x32xf32>, vector<32x32xf32>, vector<8x32xf32> -> vector<8x32xf32>
    %77 = arith.addf %75, %76 : vector<8x32xf32>
    %78 = arith.negf %77 : vector<8x32xf32>
    %79 = math.exp %78 : vector<8x32xf32>
    %cst_46 = arith.constant 1.000000e+00 : f32
    %80 = vector.broadcast %cst_46 : f32 to vector<8x32xf32>
    %81 = arith.addf %80, %79 : vector<8x32xf32>
    %82 = arith.divf %80, %81 : vector<8x32xf32>
    %83 = vector.extract_strided_slice %25 {offsets = [6, 0, 0], sizes = [1, 8, 32], strides = [1, 1, 1]} : vector<8x8x32xf32> to vector<1x8x32xf32>
    %84 = vector.shape_cast %83 : vector<1x8x32xf32> to vector<8x32xf32>
    %cst_47 = arith.constant dense<0.000000e+00> : vector<8x32xf32>
    %85 = tpu.matmul %73, %37, %cst_47 {dimension_numbers = #tpu.dot_dimension_numbers<[1], [0], [0], [1], [0, 0, 1, 1], [], []>} : vector<8x32xf32>, vector<32x32xf32>, vector<8x32xf32> -> vector<8x32xf32>
    %86 = arith.addf %84, %85 : vector<8x32xf32>
    %87 = arith.negf %86 : vector<8x32xf32>
    %88 = math.exp %87 : vector<8x32xf32>
    %cst_48 = arith.constant 1.000000e+00 : f32
    %89 = vector.broadcast %cst_48 : f32 to vector<8x32xf32>
    %90 = arith.addf %89, %88 : vector<8x32xf32>
    %91 = arith.divf %89, %90 : vector<8x32xf32>
    %92 = vector.extract_strided_slice %33 {offsets = [6, 0, 0], sizes = [1, 8, 32], strides = [1, 1, 1]} : vector<8x8x32xf32> to vector<1x8x32xf32>
    %93 = vector.shape_cast %92 : vector<1x8x32xf32> to vector<8x32xf32>
    %cst_49 = arith.constant dense<0.000000e+00> : vector<8x32xf32>
    %94 = tpu.matmul %73, %39, %cst_49 {dimension_numbers = #tpu.dot_dimension_numbers<[1], [0], [0], [1], [0, 0, 1, 1], [], []>} : vector<8x32xf32>, vector<32x32xf32>, vector<8x32xf32> -> vector<8x32xf32>
    %95 = vector.broadcast %41 : vector<1x32xf32> to vector<8x32xf32>
    %96 = arith.addf %94, %95 : vector<8x32xf32>
    %97 = arith.mulf %82, %96 : vector<8x32xf32>
    %98 = arith.addf %93, %97 : vector<8x32xf32>
    %99 = math.tanh %98 : vector<8x32xf32>
    %cst_50 = arith.constant 1.000000e+00 : f32
    %100 = vector.broadcast %cst_50 : f32 to vector<8x32xf32>
    %101 = arith.subf %100, %91 : vector<8x32xf32>
    %102 = arith.mulf %101, %99 : vector<8x32xf32>
    %103 = arith.mulf %91, %73 : vector<8x32xf32>
    %104 = arith.addf %102, %103 : vector<8x32xf32>
    %105 = vector.extract_strided_slice %13 {offsets = [5, 0, 0], sizes = [1, 8, 32], strides = [1, 1, 1]} : vector<8x8x32xf32> to vector<1x8x32xf32>
    %106 = vector.shape_cast %105 : vector<1x8x32xf32> to vector<8x32xf32>
    %cst_51 = arith.constant dense<0.000000e+00> : vector<8x32xf32>
    %107 = tpu.matmul %104, %35, %cst_51 {dimension_numbers = #tpu.dot_dimension_numbers<[1], [0], [0], [1], [0, 0, 1, 1], [], []>} : vector<8x32xf32>, vector<32x32xf32>, vector<8x32xf32> -> vector<8x32xf32>
    %108 = arith.addf %106, %107 : vector<8x32xf32>
    %109 = arith.negf %108 : vector<8x32xf32>
    %110 = math.exp %109 : vector<8x32xf32>
    %cst_52 = arith.constant 1.000000e+00 : f32
    %111 = vector.broadcast %cst_52 : f32 to vector<8x32xf32>
    %112 = arith.addf %111, %110 : vector<8x32xf32>
    %113 = arith.divf %111, %112 : vector<8x32xf32>
    %114 = vector.extract_strided_slice %25 {offsets = [5, 0, 0], sizes = [1, 8, 32], strides = [1, 1, 1]} : vector<8x8x32xf32> to vector<1x8x32xf32>
    %115 = vector.shape_cast %114 : vector<1x8x32xf32> to vector<8x32xf32>
    %cst_53 = arith.constant dense<0.000000e+00> : vector<8x32xf32>
    %116 = tpu.matmul %104, %37, %cst_53 {dimension_numbers = #tpu.dot_dimension_numbers<[1], [0], [0], [1], [0, 0, 1, 1], [], []>} : vector<8x32xf32>, vector<32x32xf32>, vector<8x32xf32> -> vector<8x32xf32>
    %117 = arith.addf %115, %116 : vector<8x32xf32>
    %118 = arith.negf %117 : vector<8x32xf32>
    %119 = math.exp %118 : vector<8x32xf32>
    %cst_54 = arith.constant 1.000000e+00 : f32
    %120 = vector.broadcast %cst_54 : f32 to vector<8x32xf32>
    %121 = arith.addf %120, %119 : vector<8x32xf32>
    %122 = arith.divf %120, %121 : vector<8x32xf32>
    %123 = vector.extract_strided_slice %33 {offsets = [5, 0, 0], sizes = [1, 8, 32], strides = [1, 1, 1]} : vector<8x8x32xf32> to vector<1x8x32xf32>
    %124 = vector.shape_cast %123 : vector<1x8x32xf32> to vector<8x32xf32>
    %cst_55 = arith.constant dense<0.000000e+00> : vector<8x32xf32>
    %125 = tpu.matmul %104, %39, %cst_55 {dimension_numbers = #tpu.dot_dimension_numbers<[1], [0], [0], [1], [0, 0, 1, 1], [], []>} : vector<8x32xf32>, vector<32x32xf32>, vector<8x32xf32> -> vector<8x32xf32>
    %126 = vector.broadcast %41 : vector<1x32xf32> to vector<8x32xf32>
    %127 = arith.addf %125, %126 : vector<8x32xf32>
    %128 = arith.mulf %113, %127 : vector<8x32xf32>
    %129 = arith.addf %124, %128 : vector<8x32xf32>
    %130 = math.tanh %129 : vector<8x32xf32>
    %cst_56 = arith.constant 1.000000e+00 : f32
    %131 = vector.broadcast %cst_56 : f32 to vector<8x32xf32>
    %132 = arith.subf %131, %122 : vector<8x32xf32>
    %133 = arith.mulf %132, %130 : vector<8x32xf32>
    %134 = arith.mulf %122, %104 : vector<8x32xf32>
    %135 = arith.addf %133, %134 : vector<8x32xf32>
    %136 = vector.extract_strided_slice %13 {offsets = [4, 0, 0], sizes = [1, 8, 32], strides = [1, 1, 1]} : vector<8x8x32xf32> to vector<1x8x32xf32>
    %137 = vector.shape_cast %136 : vector<1x8x32xf32> to vector<8x32xf32>
    %cst_57 = arith.constant dense<0.000000e+00> : vector<8x32xf32>
    %138 = tpu.matmul %135, %35, %cst_57 {dimension_numbers = #tpu.dot_dimension_numbers<[1], [0], [0], [1], [0, 0, 1, 1], [], []>} : vector<8x32xf32>, vector<32x32xf32>, vector<8x32xf32> -> vector<8x32xf32>
    %139 = arith.addf %137, %138 : vector<8x32xf32>
    %140 = arith.negf %139 : vector<8x32xf32>
    %141 = math.exp %140 : vector<8x32xf32>
    %cst_58 = arith.constant 1.000000e+00 : f32
    %142 = vector.broadcast %cst_58 : f32 to vector<8x32xf32>
    %143 = arith.addf %142, %141 : vector<8x32xf32>
    %144 = arith.divf %142, %143 : vector<8x32xf32>
    %145 = vector.extract_strided_slice %25 {offsets = [4, 0, 0], sizes = [1, 8, 32], strides = [1, 1, 1]} : vector<8x8x32xf32> to vector<1x8x32xf32>
    %146 = vector.shape_cast %145 : vector<1x8x32xf32> to vector<8x32xf32>
    %cst_59 = arith.constant dense<0.000000e+00> : vector<8x32xf32>
    %147 = tpu.matmul %135, %37, %cst_59 {dimension_numbers = #tpu.dot_dimension_numbers<[1], [0], [0], [1], [0, 0, 1, 1], [], []>} : vector<8x32xf32>, vector<32x32xf32>, vector<8x32xf32> -> vector<8x32xf32>
    %148 = arith.addf %146, %147 : vector<8x32xf32>
    %149 = arith.negf %148 : vector<8x32xf32>
    %150 = math.exp %149 : vector<8x32xf32>
    %cst_60 = arith.constant 1.000000e+00 : f32
    %151 = vector.broadcast %cst_60 : f32 to vector<8x32xf32>
    %152 = arith.addf %151, %150 : vector<8x32xf32>
    %153 = arith.divf %151, %152 : vector<8x32xf32>
    %154 = vector.extract_strided_slice %33 {offsets = [4, 0, 0], sizes = [1, 8, 32], strides = [1, 1, 1]} : vector<8x8x32xf32> to vector<1x8x32xf32>
    %155 = vector.shape_cast %154 : vector<1x8x32xf32> to vector<8x32xf32>
    %cst_61 = arith.constant dense<0.000000e+00> : vector<8x32xf32>
    %156 = tpu.matmul %135, %39, %cst_61 {dimension_numbers = #tpu.dot_dimension_numbers<[1], [0], [0], [1], [0, 0, 1, 1], [], []>} : vector<8x32xf32>, vector<32x32xf32>, vector<8x32xf32> -> vector<8x32xf32>
    %157 = vector.broadcast %41 : vector<1x32xf32> to vector<8x32xf32>
    %158 = arith.addf %156, %157 : vector<8x32xf32>
    %159 = arith.mulf %144, %158 : vector<8x32xf32>
    %160 = arith.addf %155, %159 : vector<8x32xf32>
    %161 = math.tanh %160 : vector<8x32xf32>
    %cst_62 = arith.constant 1.000000e+00 : f32
    %162 = vector.broadcast %cst_62 : f32 to vector<8x32xf32>
    %163 = arith.subf %162, %153 : vector<8x32xf32>
    %164 = arith.mulf %163, %161 : vector<8x32xf32>
    %165 = arith.mulf %153, %135 : vector<8x32xf32>
    %166 = arith.addf %164, %165 : vector<8x32xf32>
    %167 = vector.extract_strided_slice %13 {offsets = [3, 0, 0], sizes = [1, 8, 32], strides = [1, 1, 1]} : vector<8x8x32xf32> to vector<1x8x32xf32>
    %168 = vector.shape_cast %167 : vector<1x8x32xf32> to vector<8x32xf32>
    %cst_63 = arith.constant dense<0.000000e+00> : vector<8x32xf32>
    %169 = tpu.matmul %166, %35, %cst_63 {dimension_numbers = #tpu.dot_dimension_numbers<[1], [0], [0], [1], [0, 0, 1, 1], [], []>} : vector<8x32xf32>, vector<32x32xf32>, vector<8x32xf32> -> vector<8x32xf32>
    %170 = arith.addf %168, %169 : vector<8x32xf32>
    %171 = arith.negf %170 : vector<8x32xf32>
    %172 = math.exp %171 : vector<8x32xf32>
    %cst_64 = arith.constant 1.000000e+00 : f32
    %173 = vector.broadcast %cst_64 : f32 to vector<8x32xf32>
    %174 = arith.addf %173, %172 : vector<8x32xf32>
    %175 = arith.divf %173, %174 : vector<8x32xf32>
    %176 = vector.extract_strided_slice %25 {offsets = [3, 0, 0], sizes = [1, 8, 32], strides = [1, 1, 1]} : vector<8x8x32xf32> to vector<1x8x32xf32>
    %177 = vector.shape_cast %176 : vector<1x8x32xf32> to vector<8x32xf32>
    %cst_65 = arith.constant dense<0.000000e+00> : vector<8x32xf32>
    %178 = tpu.matmul %166, %37, %cst_65 {dimension_numbers = #tpu.dot_dimension_numbers<[1], [0], [0], [1], [0, 0, 1, 1], [], []>} : vector<8x32xf32>, vector<32x32xf32>, vector<8x32xf32> -> vector<8x32xf32>
    %179 = arith.addf %177, %178 : vector<8x32xf32>
    %180 = arith.negf %179 : vector<8x32xf32>
    %181 = math.exp %180 : vector<8x32xf32>
    %cst_66 = arith.constant 1.000000e+00 : f32
    %182 = vector.broadcast %cst_66 : f32 to vector<8x32xf32>
    %183 = arith.addf %182, %181 : vector<8x32xf32>
    %184 = arith.divf %182, %183 : vector<8x32xf32>
    %185 = vector.extract_strided_slice %33 {offsets = [3, 0, 0], sizes = [1, 8, 32], strides = [1, 1, 1]} : vector<8x8x32xf32> to vector<1x8x32xf32>
    %186 = vector.shape_cast %185 : vector<1x8x32xf32> to vector<8x32xf32>
    %cst_67 = arith.constant dense<0.000000e+00> : vector<8x32xf32>
    %187 = tpu.matmul %166, %39, %cst_67 {dimension_numbers = #tpu.dot_dimension_numbers<[1], [0], [0], [1], [0, 0, 1, 1], [], []>} : vector<8x32xf32>, vector<32x32xf32>, vector<8x32xf32> -> vector<8x32xf32>
    %188 = vector.broadcast %41 : vector<1x32xf32> to vector<8x32xf32>
    %189 = arith.addf %187, %188 : vector<8x32xf32>
    %190 = arith.mulf %175, %189 : vector<8x32xf32>
    %191 = arith.addf %186, %190 : vector<8x32xf32>
    %192 = math.tanh %191 : vector<8x32xf32>
    %cst_68 = arith.constant 1.000000e+00 : f32
    %193 = vector.broadcast %cst_68 : f32 to vector<8x32xf32>
    %194 = arith.subf %193, %184 : vector<8x32xf32>
    %195 = arith.mulf %194, %192 : vector<8x32xf32>
    %196 = arith.mulf %184, %166 : vector<8x32xf32>
    %197 = arith.addf %195, %196 : vector<8x32xf32>
    %198 = vector.extract_strided_slice %13 {offsets = [2, 0, 0], sizes = [1, 8, 32], strides = [1, 1, 1]} : vector<8x8x32xf32> to vector<1x8x32xf32>
    %199 = vector.shape_cast %198 : vector<1x8x32xf32> to vector<8x32xf32>
    %cst_69 = arith.constant dense<0.000000e+00> : vector<8x32xf32>
    %200 = tpu.matmul %197, %35, %cst_69 {dimension_numbers = #tpu.dot_dimension_numbers<[1], [0], [0], [1], [0, 0, 1, 1], [], []>} : vector<8x32xf32>, vector<32x32xf32>, vector<8x32xf32> -> vector<8x32xf32>
    %201 = arith.addf %199, %200 : vector<8x32xf32>
    %202 = arith.negf %201 : vector<8x32xf32>
    %203 = math.exp %202 : vector<8x32xf32>
    %cst_70 = arith.constant 1.000000e+00 : f32
    %204 = vector.broadcast %cst_70 : f32 to vector<8x32xf32>
    %205 = arith.addf %204, %203 : vector<8x32xf32>
    %206 = arith.divf %204, %205 : vector<8x32xf32>
    %207 = vector.extract_strided_slice %25 {offsets = [2, 0, 0], sizes = [1, 8, 32], strides = [1, 1, 1]} : vector<8x8x32xf32> to vector<1x8x32xf32>
    %208 = vector.shape_cast %207 : vector<1x8x32xf32> to vector<8x32xf32>
    %cst_71 = arith.constant dense<0.000000e+00> : vector<8x32xf32>
    %209 = tpu.matmul %197, %37, %cst_71 {dimension_numbers = #tpu.dot_dimension_numbers<[1], [0], [0], [1], [0, 0, 1, 1], [], []>} : vector<8x32xf32>, vector<32x32xf32>, vector<8x32xf32> -> vector<8x32xf32>
    %210 = arith.addf %208, %209 : vector<8x32xf32>
    %211 = arith.negf %210 : vector<8x32xf32>
    %212 = math.exp %211 : vector<8x32xf32>
    %cst_72 = arith.constant 1.000000e+00 : f32
    %213 = vector.broadcast %cst_72 : f32 to vector<8x32xf32>
    %214 = arith.addf %213, %212 : vector<8x32xf32>
    %215 = arith.divf %213, %214 : vector<8x32xf32>
    %216 = vector.extract_strided_slice %33 {offsets = [2, 0, 0], sizes = [1, 8, 32], strides = [1, 1, 1]} : vector<8x8x32xf32> to vector<1x8x32xf32>
    %217 = vector.shape_cast %216 : vector<1x8x32xf32> to vector<8x32xf32>
    %cst_73 = arith.constant dense<0.000000e+00> : vector<8x32xf32>
    %218 = tpu.matmul %197, %39, %cst_73 {dimension_numbers = #tpu.dot_dimension_numbers<[1], [0], [0], [1], [0, 0, 1, 1], [], []>} : vector<8x32xf32>, vector<32x32xf32>, vector<8x32xf32> -> vector<8x32xf32>
    %219 = vector.broadcast %41 : vector<1x32xf32> to vector<8x32xf32>
    %220 = arith.addf %218, %219 : vector<8x32xf32>
    %221 = arith.mulf %206, %220 : vector<8x32xf32>
    %222 = arith.addf %217, %221 : vector<8x32xf32>
    %223 = math.tanh %222 : vector<8x32xf32>
    %cst_74 = arith.constant 1.000000e+00 : f32
    %224 = vector.broadcast %cst_74 : f32 to vector<8x32xf32>
    %225 = arith.subf %224, %215 : vector<8x32xf32>
    %226 = arith.mulf %225, %223 : vector<8x32xf32>
    %227 = arith.mulf %215, %197 : vector<8x32xf32>
    %228 = arith.addf %226, %227 : vector<8x32xf32>
    %229 = vector.extract_strided_slice %13 {offsets = [1, 0, 0], sizes = [1, 8, 32], strides = [1, 1, 1]} : vector<8x8x32xf32> to vector<1x8x32xf32>
    %230 = vector.shape_cast %229 : vector<1x8x32xf32> to vector<8x32xf32>
    %cst_75 = arith.constant dense<0.000000e+00> : vector<8x32xf32>
    %231 = tpu.matmul %228, %35, %cst_75 {dimension_numbers = #tpu.dot_dimension_numbers<[1], [0], [0], [1], [0, 0, 1, 1], [], []>} : vector<8x32xf32>, vector<32x32xf32>, vector<8x32xf32> -> vector<8x32xf32>
    %232 = arith.addf %230, %231 : vector<8x32xf32>
    %233 = arith.negf %232 : vector<8x32xf32>
    %234 = math.exp %233 : vector<8x32xf32>
    %cst_76 = arith.constant 1.000000e+00 : f32
    %235 = vector.broadcast %cst_76 : f32 to vector<8x32xf32>
    %236 = arith.addf %235, %234 : vector<8x32xf32>
    %237 = arith.divf %235, %236 : vector<8x32xf32>
    %238 = vector.extract_strided_slice %25 {offsets = [1, 0, 0], sizes = [1, 8, 32], strides = [1, 1, 1]} : vector<8x8x32xf32> to vector<1x8x32xf32>
    %239 = vector.shape_cast %238 : vector<1x8x32xf32> to vector<8x32xf32>
    %cst_77 = arith.constant dense<0.000000e+00> : vector<8x32xf32>
    %240 = tpu.matmul %228, %37, %cst_77 {dimension_numbers = #tpu.dot_dimension_numbers<[1], [0], [0], [1], [0, 0, 1, 1], [], []>} : vector<8x32xf32>, vector<32x32xf32>, vector<8x32xf32> -> vector<8x32xf32>
    %241 = arith.addf %239, %240 : vector<8x32xf32>
    %242 = arith.negf %241 : vector<8x32xf32>
    %243 = math.exp %242 : vector<8x32xf32>
    %cst_78 = arith.constant 1.000000e+00 : f32
    %244 = vector.broadcast %cst_78 : f32 to vector<8x32xf32>
    %245 = arith.addf %244, %243 : vector<8x32xf32>
    %246 = arith.divf %244, %245 : vector<8x32xf32>
    %247 = vector.extract_strided_slice %33 {offsets = [1, 0, 0], sizes = [1, 8, 32], strides = [1, 1, 1]} : vector<8x8x32xf32> to vector<1x8x32xf32>
    %248 = vector.shape_cast %247 : vector<1x8x32xf32> to vector<8x32xf32>
    %cst_79 = arith.constant dense<0.000000e+00> : vector<8x32xf32>
    %249 = tpu.matmul %228, %39, %cst_79 {dimension_numbers = #tpu.dot_dimension_numbers<[1], [0], [0], [1], [0, 0, 1, 1], [], []>} : vector<8x32xf32>, vector<32x32xf32>, vector<8x32xf32> -> vector<8x32xf32>
    %250 = vector.broadcast %41 : vector<1x32xf32> to vector<8x32xf32>
    %251 = arith.addf %249, %250 : vector<8x32xf32>
    %252 = arith.mulf %237, %251 : vector<8x32xf32>
    %253 = arith.addf %248, %252 : vector<8x32xf32>
    %254 = math.tanh %253 : vector<8x32xf32>
    %cst_80 = arith.constant 1.000000e+00 : f32
    %255 = vector.broadcast %cst_80 : f32 to vector<8x32xf32>
    %256 = arith.subf %255, %246 : vector<8x32xf32>
    %257 = arith.mulf %256, %254 : vector<8x32xf32>
    %258 = arith.mulf %246, %228 : vector<8x32xf32>
    %259 = arith.addf %257, %258 : vector<8x32xf32>
    %260 = vector.extract_strided_slice %13 {offsets = [0, 0, 0], sizes = [1, 8, 32], strides = [1, 1, 1]} : vector<8x8x32xf32> to vector<1x8x32xf32>
    %261 = vector.shape_cast %260 : vector<1x8x32xf32> to vector<8x32xf32>
    %cst_81 = arith.constant dense<0.000000e+00> : vector<8x32xf32>
    %262 = tpu.matmul %259, %35, %cst_81 {dimension_numbers = #tpu.dot_dimension_numbers<[1], [0], [0], [1], [0, 0, 1, 1], [], []>} : vector<8x32xf32>, vector<32x32xf32>, vector<8x32xf32> -> vector<8x32xf32>
    %263 = arith.addf %261, %262 : vector<8x32xf32>
    %264 = arith.negf %263 : vector<8x32xf32>
    %265 = math.exp %264 : vector<8x32xf32>
    %cst_82 = arith.constant 1.000000e+00 : f32
    %266 = vector.broadcast %cst_82 : f32 to vector<8x32xf32>
    %267 = arith.addf %266, %265 : vector<8x32xf32>
    %268 = arith.divf %266, %267 : vector<8x32xf32>
    %269 = vector.extract_strided_slice %25 {offsets = [0, 0, 0], sizes = [1, 8, 32], strides = [1, 1, 1]} : vector<8x8x32xf32> to vector<1x8x32xf32>
    %270 = vector.shape_cast %269 : vector<1x8x32xf32> to vector<8x32xf32>
    %cst_83 = arith.constant dense<0.000000e+00> : vector<8x32xf32>
    %271 = tpu.matmul %259, %37, %cst_83 {dimension_numbers = #tpu.dot_dimension_numbers<[1], [0], [0], [1], [0, 0, 1, 1], [], []>} : vector<8x32xf32>, vector<32x32xf32>, vector<8x32xf32> -> vector<8x32xf32>
    %272 = arith.addf %270, %271 : vector<8x32xf32>
    %273 = arith.negf %272 : vector<8x32xf32>
    %274 = math.exp %273 : vector<8x32xf32>
    %cst_84 = arith.constant 1.000000e+00 : f32
    %275 = vector.broadcast %cst_84 : f32 to vector<8x32xf32>
    %276 = arith.addf %275, %274 : vector<8x32xf32>
    %277 = arith.divf %275, %276 : vector<8x32xf32>
    %278 = vector.extract_strided_slice %33 {offsets = [0, 0, 0], sizes = [1, 8, 32], strides = [1, 1, 1]} : vector<8x8x32xf32> to vector<1x8x32xf32>
    %279 = vector.shape_cast %278 : vector<1x8x32xf32> to vector<8x32xf32>
    %cst_85 = arith.constant dense<0.000000e+00> : vector<8x32xf32>
    %280 = tpu.matmul %259, %39, %cst_85 {dimension_numbers = #tpu.dot_dimension_numbers<[1], [0], [0], [1], [0, 0, 1, 1], [], []>} : vector<8x32xf32>, vector<32x32xf32>, vector<8x32xf32> -> vector<8x32xf32>
    %281 = vector.broadcast %41 : vector<1x32xf32> to vector<8x32xf32>
    %282 = arith.addf %280, %281 : vector<8x32xf32>
    %283 = arith.mulf %268, %282 : vector<8x32xf32>
    %284 = arith.addf %279, %283 : vector<8x32xf32>
    %285 = math.tanh %284 : vector<8x32xf32>
    %cst_86 = arith.constant 1.000000e+00 : f32
    %286 = vector.broadcast %cst_86 : f32 to vector<8x32xf32>
    %287 = arith.subf %286, %277 : vector<8x32xf32>
    %288 = arith.mulf %287, %285 : vector<8x32xf32>
    %289 = arith.mulf %277, %259 : vector<8x32xf32>
    %290 = arith.addf %288, %289 : vector<8x32xf32>
    %c0_87 = arith.constant 0 : index
    %c0_88 = arith.constant 0 : index
    %291 = vector.load %arg5[%c0_87, %c0_88] : memref<32x16xf32, #tpu.memory_space<vmem>>, vector<32x16xf32>
    %cst_89 = arith.constant dense<0.000000e+00> : vector<8x16xf32>
    %292 = tpu.matmul %290, %291, %cst_89 {dimension_numbers = #tpu.dot_dimension_numbers<[1], [0], [0], [1], [0, 0, 1, 1], [], []>} : vector<8x32xf32>, vector<32x16xf32>, vector<8x16xf32> -> vector<8x16xf32>
    %c0_90 = arith.constant 0 : index
    %c0_91 = arith.constant 0 : index
    %293 = vector.load %arg6[%c0_90, %c0_91] : memref<1x16xf32, #tpu.memory_space<vmem>>, vector<1x16xf32>
    %294 = vector.broadcast %293 : vector<1x16xf32> to vector<8x16xf32>
    %295 = arith.addf %292, %294 : vector<8x16xf32>
    %c0_92 = arith.constant 0 : index
    %c0_93 = arith.constant 0 : index
    %296 = vector.load %arg7[%c0_92, %c0_93] : memref<8x16xf32, #tpu.memory_space<vmem>>, vector<8x16xf32>
    tpu.vector_store %arg7[%c0_92, %c0_93], %295 {strides = array<i32>} : memref<8x16xf32, #tpu.memory_space<vmem>>, vector<8x16xf32>,
    return
  }
}

</mosaic_0001>

<llo_original>
// kernel: tpu_custom_call.1
$region0: #{tpu_custom_call.1}
  #allocation0 [shape = 'u32[]', space=smem, size = 0x4, offset = 0x4, fixed_abs, tag = 'smem constant byte address 0x4 - core index']
  #allocation1 [shape = 'u32[144,128]{1,0:T(1,128)}', space=vmem, size = 0x12000, scoped, tag = 'internal scratch']
  %s0 = inlined_call_operand.vmem [shape: f32[8,8,5], index: 0, kind: input, shape index: {}]
  %s1 = inlined_call_operand.vmem [shape: f32[3,5,32], index: 1, kind: input, shape index: {}]
  %s2 = inlined_call_operand.vmem [shape: f32[3,32,32], index: 2, kind: input, shape index: {}]
  %s3 = inlined_call_operand.vmem [shape: f32[3,1,32], index: 3, kind: input, shape index: {}]
  %s4 = inlined_call_operand.vmem [shape: f32[3,1,32], index: 4, kind: input, shape index: {}]
  %s5 = inlined_call_operand.vmem [shape: f32[32,16], index: 5, kind: input, shape index: {}]
  %s6 = inlined_call_operand.vmem [shape: f32[1,16], index: 6, kind: input, shape index: {}]
  %s7 = inlined_call_operand.hbm [shape: f32[8,16], index: 7, kind: output, shape index: {}]
  %s8 = sld [smem:[#allocation0]]
  $region38: #{tpu_custom_call.1} parent=0
    _
  %s10 = ssub.s32 1, %s8
  %s11 = scalar_select 0, %s10, %s8
  $region1: #{tpu_custom_call.1} parent=0
    #allocation2 [shape = 'u8[4096]{0}', space=vmem, size = 0x1000, scoped, tag = 'output window, operand 0, single buffered']
    #allocation3 [shape = 's32[1]{0}', space=sflag, size = 0x4, scoped, tag = 'scoped memory for tpu_custom_call.1']
    %12 = vsyncpa [#allocation3], 0
    // Predicated region
    $region2: #{tpu_custom_call.1} parent=1 // pred_check
      _
    $region3: #{tpu_custom_call.1} parent=1 // pred_check_branch
      %14 = sbr.rel (0) target = $region5
    $region4: #{tpu_custom_call.1} parent=1 // pred_region
      _
    $region5: #{tpu_custom_call.1} parent=1 // pred_fallthru
      _
    // Predicated region
    $region6: #{tpu_custom_call.1} parent=1 // pred_check
      _
    $region7: #{tpu_custom_call.1} parent=1 // pred_check_branch
      %16 = sbr.rel (0) target = $region9
    $region8: #{tpu_custom_call.1} parent=1 // pred_region
      _
    $region9: #{tpu_custom_call.1} parent=1 // pred_fallthru
      _
    // Predicated region
    $region10: #{tpu_custom_call.1} parent=1 // pred_check
      _
    $region11: #{tpu_custom_call.1} parent=1 // pred_check_branch
      %18 = sbr.rel (0) target = $region13
    $region12: #{tpu_custom_call.1} parent=1 // pred_region
      _
    $region13: #{tpu_custom_call.1} parent=1 // pred_fallthru
      _
    // Predicated region
    $region14: #{tpu_custom_call.1} parent=1 // pred_check
      _
    $region15: #{tpu_custom_call.1} parent=1 // pred_check_branch
      %20 = sbr.rel (0) target = $region17
    $region16: #{tpu_custom_call.1} parent=1 // pred_region
      _
    $region17: #{tpu_custom_call.1} parent=1 // pred_fallthru
      _
    // Predicated region
    $region18: #{tpu_custom_call.1} parent=1 // pred_check
      _
    $region19: #{tpu_custom_call.1} parent=1 // pred_check_branch
      %22 = sbr.rel (0) target = $region21
    $region20: #{tpu_custom_call.1} parent=1 // pred_region
      _
    $region21: #{tpu_custom_call.1} parent=1 // pred_fallthru
      _
    // Predicated region
    $region22: #{tpu_custom_call.1} parent=1 // pred_check
      _
    $region23: #{tpu_custom_call.1} parent=1 // pred_check_branch
      %24 = sbr.rel (0) target = $region25
    $region24: #{tpu_custom_call.1} parent=1 // pred_region
      _
    $region25: #{tpu_custom_call.1} parent=1 // pred_fallthru
      _
    // Predicated region
    $region26: #{tpu_custom_call.1} parent=1 // pred_check
      _
    $region27: #{tpu_custom_call.1} parent=1 // pred_check_branch
      %26 = sbr.rel (0) target = $region29
    $region28: #{tpu_custom_call.1} parent=1 // pred_region
      _
    $region29: #{tpu_custom_call.1} parent=1 // pred_fallthru
      _
    %v27 = vld [vmem:[%s0] sm:$0xff]
    %v28 = vld [vmem:[%s0 + $0x8] sm:$0xff]
    %v29 = vld [vmem:[%s0 + $0x10] sm:$0xff]
    %v30 = vld [vmem:[%s0 + $0x18] sm:$0xff]
    %v31 = vld [vmem:[%s0 + $0x20] sm:$0xff]
    %v32 = vld [vmem:[%s0 + $0x28] sm:$0xff]
    %v33 = vld [vmem:[%s0 + $0x30] sm:$0xff]
    %v34 = vld [vmem:[%s0 + $0x38] sm:$0xff]
    %v35 = vld [vmem:[%s1] sm:$0x1f]
    %v36 = vld [vmem:[%s3] sm:$0x1]
    %v38 = vlaneseq
    %v39 = vshrl.u32 %v38, 7
    %v40 = vsub.s32 0, %v39
    %v41 = vrot.slane %v36, %v40
    %vm43 = vcmask 39936
    %v45 = vsel %vm43, %v27, 0
    %v48 = vsel %vm43, %v28, 0
    %v51 = vsel %vm43, %v29, 0
    %v54 = vsel %vm43, %v30, 0
    %v57 = vsel %vm43, %v31, 0
    %v60 = vsel %vm43, %v32, 0
    %v63 = vsel %vm43, %v33, 0
    %v66 = vsel %vm43, %v34, 0
    %vm68 = vcmask 1044480
    %v70 = vsel %vm68, %v35, 0
    %72 = vmatprep.subr.mxu0 0.0
    %73 = vmatpush1.msra.mxu0 0.0
    %74 = vmatprep.subr.mxu0 0.0
    %75 = vmatpush1.msra.mxu0 0.0
    %76 = vmatprep.subr.mxu0 0.0
    %77 = vmatpush1.msra.mxu0 0.0
    %78 = vmatprep.subr.mxu0 0.0
    %79 = vmatpush1.msra.mxu0 0.0
    %80 = vmatprep.subr.mxu0 0.0
    %81 = vmatpush1.msra.mxu0 0.0
    %82 = vmatprep.subr.mxu0 0.0
    %83 = vmatpush1.msra.mxu0 0.0
    %84 = vmatprep.subr.mxu0 0.0
    %85 = vmatpush1.msra.mxu0 0.0
    %86 = vmatprep.subr.mxu0 0.0
    %87 = vmatpush1.msra.mxu0 0.0
    %88 = vmatprep.subr.mxu0 0.0
    %89 = vmatpush1.msra.mxu0 0.0
    %90 = vmatprep.subr.mxu0 0.0
    %91 = vmatpush1.msra.mxu0 0.0
    %92 = vmatprep.subr.mxu0 0.0
    %93 = vmatpush1.msra.mxu0 0.0
    %94 = vmatprep.subr.mxu0 0.0
    %95 = vmatpush1.msra.mxu0 0.0
    %96 = vmatprep.subr.mxu0 0.0
    %97 = vmatpush1.msra.mxu0 0.0
    %98 = vmatprep.subr.mxu0 0.0
    %99 = vmatpush1.msra.mxu0 0.0
    %100 = vmatprep.subr.mxu0 0.0
    %101 = vmatpush1.msra.mxu0 0.0
    %102 = vmatprep.subr.mxu0 0.0
    %103 = vmatpush1.msra.mxu0 %v70
    %104 = vmatprep.subr.mxu0 0.0
    %105 = vmatpush2.msra.mxu0 0.0
    %106 = vmatprep.subr.mxu0 0.0
    %107 = vmatpush2.msra.mxu0 0.0
    %108 = vmatprep.subr.mxu0 0.0
    %109 = vmatpush2.msra.mxu0 0.0
    %110 = vmatprep.subr.mxu0 0.0
    %111 = vmatpush2.msra.mxu0 0.0
    %112 = vmatprep.subr.mxu0 0.0
    %113 = vmatpush2.msra.mxu0 0.0
    %114 = vmatprep.subr.mxu0 0.0
    %115 = vmatpush2.msra.mxu0 0.0
    %116 = vmatprep.subr.mxu0 0.0
    %117 = vmatpush2.msra.mxu0 0.0
    %118 = vmatprep.subr.mxu0 0.0
    %119 = vmatpush2.msra.mxu0 0.0
    %120 = vmatprep.subr.mxu0 0.0
    %121 = vmatpush2.msra.mxu0 0.0
    %122 = vmatprep.subr.mxu0 0.0
    %123 = vmatpush2.msra.mxu0 0.0
    %124 = vmatprep.subr.mxu0 0.0
    %125 = vmatpush2.msra.mxu0 0.0
    %126 = vmatprep.subr.mxu0 0.0
    %127 = vmatpush2.msra.mxu0 0.0
    %128 = vmatprep.subr.mxu0 0.0
    %129 = vmatpush2.msra.mxu0 0.0
    %130 = vmatprep.subr.mxu0 0.0
    %131 = vmatpush2.msra.mxu0 0.0
    %132 = vmatprep.subr.mxu0 0.0
    %133 = vmatpush2.msra.mxu0 0.0
    %134 = vmatprep.subr.mxu0 0.0
    %135 = vmatpush2.msra.mxu0 0.0
    %136 = vmatprep.mubr.f32.mxu0 0.0
    %137 = vmatmul.mubr.f32.gmra.mxu0 %v45
    %v138 = vpop.f32.mrf.mxu0
    %v139 = vadd.f32 %v41, %v138
    %v140 = vpop.f32.mrf.mxu0
    %141 = vmatprep.mubr.f32.mxu0 0.0
    %142 = vmatmul.mubr.f32.gmra.mxu0 %v48
    %v143 = vpop.f32.mrf.mxu0
    %v144 = vadd.f32 %v41, %v143
    %v145 = vpop.f32.mrf.mxu0
    %146 = vmatprep.mubr.f32.mxu0 0.0
    %147 = vmatmul.mubr.f32.gmra.mxu0 %v51
    %v148 = vpop.f32.mrf.mxu0
    %v149 = vadd.f32 %v41, %v148
    %v150 = vpop.f32.mrf.mxu0
    %151 = vmatprep.mubr.f32.mxu0 0.0
    %152 = vmatmul.mubr.f32.gmra.mxu0 %v54
    %v153 = vpop.f32.mrf.mxu0
    %v154 = vadd.f32 %v41, %v153
    %v155 = vpop.f32.mrf.mxu0
    %156 = vmatprep.mubr.f32.mxu0 0.0
    %157 = vmatmul.mubr.f32.gmra.mxu0 %v57
    %v158 = vpop.f32.mrf.mxu0
    %v159 = vadd.f32 %v41, %v158
    %v160 = vpop.f32.mrf.mxu0
    %161 = vmatprep.mubr.f32.mxu0 0.0
    %162 = vmatmul.mubr.f32.gmra.mxu0 %v60
    %v163 = vpop.f32.mrf.mxu0
    %v164 = vadd.f32 %v41, %v163
    %v165 = vpop.f32.mrf.mxu0
    %166 = vmatprep.mubr.f32.mxu0 0.0
    %167 = vmatmul.mubr.f32.gmra.mxu0 %v63
    %v168 = vpop.f32.mrf.mxu0
    %v169 = vadd.f32 %v41, %v168
    %v170 = vpop.f32.mrf.mxu0
    %171 = vmatprep.mubr.f32.mxu0 0.0
    %172 = vmatmul.mubr.f32.gmra.mxu0 %v66
    %v173 = vpop.f32.mrf.mxu0
    %v174 = vadd.f32 %v41, %v173
    %v175 = vpop.f32.mrf.mxu0
    %176 = vdwg.mxu0
    %v177 = vld [vmem:[%s4] sm:$0x1]
    %v179 = vlaneseq
    %v180 = vshrl.u32 %v179, 7
    %v181 = vsub.s32 0, %v180
    %v182 = vrot.slane %v177, %v181
    %v184 = vadd.f32 %v139, %v182
    %v185 = vadd.f32 %v144, %v182
    %v186 = vadd.f32 %v149, %v182
    %v187 = vadd.f32 %v154, %v182
    %v188 = vadd.f32 %v159, %v182
    %v189 = vadd.f32 %v164, %v182
    %v190 = vadd.f32 %v169, %v182
    %v191 = vadd.f32 %v174, %v182
    %s192 = scalar_lea.vmem %s1, 8
    %v193 = vld [vmem:[%s192] sm:$0x1f]
    %s194 = scalar_lea.vmem %s3, 1
    %v195 = vld [vmem:[%s194] sm:$0x1]
    %v197 = vlaneseq
    %v198 = vshrl.u32 %v197, 7
    %v199 = vsub.s32 0, %v198
    %v200 = vrot.slane %v195, %v199
    %v203 = vsel %vm68, %v193, 0
    %205 = vmatprep.subr.mxu0 0.0
    %206 = vmatpush1.msra.mxu0 0.0
    %207 = vmatprep.subr.mxu0 0.0
    %208 = vmatpush1.msra.mxu0 0.0
    %209 = vmatprep.subr.mxu0 0.0
    %210 = vmatpush1.msra.mxu0 0.0
    %211 = vmatprep.subr.mxu0 0.0
    %212 = vmatpush1.msra.mxu0 0.0
    %213 = vmatprep.subr.mxu0 0.0
    %214 = vmatpush1.msra.mxu0 0.0
    %215 = vmatprep.subr.mxu0 0.0
    %216 = vmatpush1.msra.mxu0 0.0
    %217 = vmatprep.subr.mxu0 0.0
    %218 = vmatpush1.msra.mxu0 0.0
    %219 = vmatprep.subr.mxu0 0.0
    %220 = vmatpush1.msra.mxu0 0.0
    %221 = vmatprep.subr.mxu0 0.0
    %222 = vmatpush1.msra.mxu0 0.0
    %223 = vmatprep.subr.mxu0 0.0
    %224 = vmatpush1.msra.mxu0 0.0
    %225 = vmatprep.subr.mxu0 0.0
    %226 = vmatpush1.msra.mxu0 0.0
    %227 = vmatprep.subr.mxu0 0.0
    %228 = vmatpush1.msra.mxu0 0.0
    %229 = vmatprep.subr.mxu0 0.0
    %230 = vmatpush1.msra.mxu0 0.0
    %231 = vmatprep.subr.mxu0 0.0
    %232 = vmatpush1.msra.mxu0 0.0
    %233 = vmatprep.subr.mxu0 0.0
    %234 = vmatpush1.msra.mxu0 0.0
    %235 = vmatprep.subr.mxu0 0.0
    %236 = vmatpush1.msra.mxu0 %v203
    %237 = vmatprep.subr.mxu0 0.0
    %238 = vmatpush2.msra.mxu0 0.0
    %239 = vmatprep.subr.mxu0 0.0
    %240 = vmatpush2.msra.mxu0 0.0
    %241 = vmatprep.subr.mxu0 0.0
    %242 = vmatpush2.msra.mxu0 0.0
    %243 = vmatprep.subr.mxu0 0.0
    %244 = vmatpush2.msra.mxu0 0.0
    %245 = vmatprep.subr.mxu0 0.0
    %246 = vmatpush2.msra.mxu0 0.0
    %247 = vmatprep.subr.mxu0 0.0
    %248 = vmatpush2.msra.mxu0 0.0
    %249 = vmatprep.subr.mxu0 0.0
    %250 = vmatpush2.msra.mxu0 0.0
    %251 = vmatprep.subr.mxu0 0.0
    %252 = vmatpush2.msra.mxu0 0.0
    %253 = vmatprep.subr.mxu0 0.0
    %254 = vmatpush2.msra.mxu0 0.0
    %255 = vmatprep.subr.mxu0 0.0
    %256 = vmatpush2.msra.mxu0 0.0
    %257 = vmatprep.subr.mxu0 0.0
    %258 = vmatpush2.msra.mxu0 0.0
    %259 = vmatprep.subr.mxu0 0.0
    %260 = vmatpush2.msra.mxu0 0.0
    %261 = vmatprep.subr.mxu0 0.0
    %262 = vmatpush2.msra.mxu0 0.0
    %263 = vmatprep.subr.mxu0 0.0
    %264 = vmatpush2.msra.mxu0 0.0
    %265 = vmatprep.subr.mxu0 0.0
    %266 = vmatpush2.msra.mxu0 0.0
    %267 = vmatprep.subr.mxu0 0.0
    %268 = vmatpush2.msra.mxu0 0.0
    %269 = vmatprep.mubr.f32.mxu0 0.0
    %270 = vmatmul.mubr.f32.gmra.mxu0 %v45
    %v271 = vpop.f32.mrf.mxu0
    %v272 = vadd.f32 %v200, %v271
    %v273 = vpop.f32.mrf.mxu0
    %274 = vmatprep.mubr.f32.mxu0 0.0
    %275 = vmatmul.mubr.f32.gmra.mxu0 %v48
    %v276 = vpop.f32.mrf.mxu0
    %v277 = vadd.f32 %v200, %v276
    %v278 = vpop.f32.mrf.mxu0
    %279 = vmatprep.mubr.f32.mxu0 0.0
    %280 = vmatmul.mubr.f32.gmra.mxu0 %v51
    %v281 = vpop.f32.mrf.mxu0
    %v282 = vadd.f32 %v200, %v281
    %v283 = vpop.f32.mrf.mxu0
    %284 = vmatprep.mubr.f32.mxu0 0.0
    %285 = vmatmul.mubr.f32.gmra.mxu0 %v54
    %v286 = vpop.f32.mrf.mxu0
    %v287 = vadd.f32 %v200, %v286
    %v288 = vpop.f32.mrf.mxu0
    %289 = vmatprep.mubr.f32.mxu0 0.0
    %290 = vmatmul.mubr.f32.gmra.mxu0 %v57
    %v291 = vpop.f32.mrf.mxu0
    %v292 = vadd.f32 %v200, %v291
    %v293 = vpop.f32.mrf.mxu0
    %294 = vmatprep.mubr.f32.mxu0 0.0
    %295 = vmatmul.mubr.f32.gmra.mxu0 %v60
    %v296 = vpop.f32.mrf.mxu0
    %v297 = vadd.f32 %v200, %v296
    %v298 = vpop.f32.mrf.mxu0
    %299 = vmatprep.mubr.f32.mxu0 0.0
    %300 = vmatmul.mubr.f32.gmra.mxu0 %v63
    %v301 = vpop.f32.mrf.mxu0
    %v302 = vadd.f32 %v200, %v301
    %v303 = vpop.f32.mrf.mxu0
    %304 = vmatprep.mubr.f32.mxu0 0.0
    %305 = vmatmul.mubr.f32.gmra.mxu0 %v66
    %v306 = vpop.f32.mrf.mxu0
    %v307 = vadd.f32 %v200, %v306
    %v308 = vpop.f32.mrf.mxu0
    %309 = vdwg.mxu0
    %s310 = scalar_lea.vmem %s4, 1
    %v311 = vld [vmem:[%s310] sm:$0x1]
    %v313 = vlaneseq
    %v314 = vshrl.u32 %v313, 7
    %v315 = vsub.s32 0, %v314
    %v316 = vrot.slane %v311, %v315
    %v318 = vadd.f32 %v272, %v316
    %v319 = vadd.f32 %v277, %v316
    %v320 = vadd.f32 %v282, %v316
    %v321 = vadd.f32 %v287, %v316
    %v322 = vadd.f32 %v292, %v316
    %v323 = vadd.f32 %v297, %v316
    %v324 = vadd.f32 %v302, %v316
    %v325 = vadd.f32 %v307, %v316
    %s326 = scalar_lea.vmem %s1, 16
    %v327 = vld [vmem:[%s326] sm:$0x1f]
    %s328 = scalar_lea.vmem %s3, 2
    %v329 = vld [vmem:[%s328] sm:$0x1]
    %v331 = vlaneseq
    %v332 = vshrl.u32 %v331, 7
    %v333 = vsub.s32 0, %v332
    %v334 = vrot.slane %v329, %v333
    %v337 = vsel %vm68, %v327, 0
    %339 = vmatprep.subr.mxu0 0.0
    %340 = vmatpush1.msra.mxu0 0.0
    %341 = vmatprep.subr.mxu0 0.0
    %342 = vmatpush1.msra.mxu0 0.0
    %343 = vmatprep.subr.mxu0 0.0
    %344 = vmatpush1.msra.mxu0 0.0
    %345 = vmatprep.subr.mxu0 0.0
    %346 = vmatpush1.msra.mxu0 0.0
    %347 = vmatprep.subr.mxu0 0.0
    %348 = vmatpush1.msra.mxu0 0.0
    %349 = vmatprep.subr.mxu0 0.0
    %350 = vmatpush1.msra.mxu0 0.0
    %351 = vmatprep.subr.mxu0 0.0
    %352 = vmatpush1.msra.mxu0 0.0
    %353 = vmatprep.subr.mxu0 0.0
    %354 = vmatpush1.msra.mxu0 0.0
    %355 = vmatprep.subr.mxu0 0.0
    %356 = vmatpush1.msra.mxu0 0.0
    %357 = vmatprep.subr.mxu0 0.0
    %358 = vmatpush1.msra.mxu0 0.0
    %359 = vmatprep.subr.mxu0 0.0
    %360 = vmatpush1.msra.mxu0 0.0
    %361 = vmatprep.subr.mxu0 0.0
    %362 = vmatpush1.msra.mxu0 0.0
    %363 = vmatprep.subr.mxu0 0.0
    %364 = vmatpush1.msra.mxu0 0.0
    %365 = vmatprep.subr.mxu0 0.0
    %366 = vmatpush1.msra.mxu0 0.0
    %367 = vmatprep.subr.mxu0 0.0
    %368 = vmatpush1.msra.mxu0 0.0
    %369 = vmatprep.subr.mxu0 0.0
    %370 = vmatpush1.msra.mxu0 %v337
    %371 = vmatprep.subr.mxu0 0.0
    %372 = vmatpush2.msra.mxu0 0.0
    %373 = vmatprep.subr.mxu0 0.0
    %374 = vmatpush2.msra.mxu0 0.0
    %375 = vmatprep.subr.mxu0 0.0
    %376 = vmatpush2.msra.mxu0 0.0
    %377 = vmatprep.subr.mxu0 0.0
    %378 = vmatpush2.msra.mxu0 0.0
    %379 = vmatprep.subr.mxu0 0.0
    %380 = vmatpush2.msra.mxu0 0.0
    %381 = vmatprep.subr.mxu0 0.0
    %382 = vmatpush2.msra.mxu0 0.0
    %383 = vmatprep.subr.mxu0 0.0
    %384 = vmatpush2.msra.mxu0 0.0
    %385 = vmatprep.subr.mxu0 0.0
    %386 = vmatpush2.msra.mxu0 0.0
    %387 = vmatprep.subr.mxu0 0.0
    %388 = vmatpush2.msra.mxu0 0.0
    %389 = vmatprep.subr.mxu0 0.0
    %390 = vmatpush2.msra.mxu0 0.0
    %391 = vmatprep.subr.mxu0 0.0
    %392 = vmatpush2.msra.mxu0 0.0
    %393 = vmatprep.subr.mxu0 0.0
    %394 = vmatpush2.msra.mxu0 0.0
    %395 = vmatprep.subr.mxu0 0.0
    %396 = vmatpush2.msra.mxu0 0.0
    %397 = vmatprep.subr.mxu0 0.0
    %398 = vmatpush2.msra.mxu0 0.0
    %399 = vmatprep.subr.mxu0 0.0
    %400 = vmatpush2.msra.mxu0 0.0
    %401 = vmatprep.subr.mxu0 0.0
    %402 = vmatpush2.msra.mxu0 0.0
    %403 = vmatprep.mubr.f32.mxu0 0.0
    %404 = vmatmul.mubr.f32.gmra.mxu0 %v45
    %v405 = vpop.f32.mrf.mxu0
    %v406 = vadd.f32 %v334, %v405
    %v407 = vpop.f32.mrf.mxu0
    %408 = vmatprep.mubr.f32.mxu0 0.0
    %409 = vmatmul.mubr.f32.gmra.mxu0 %v48
    %v410 = vpop.f32.mrf.mxu0
    %v411 = vadd.f32 %v334, %v410
    %v412 = vpop.f32.mrf.mxu0
    %413 = vmatprep.mubr.f32.mxu0 0.0
    %414 = vmatmul.mubr.f32.gmra.mxu0 %v51
    %v415 = vpop.f32.mrf.mxu0
    %v416 = vadd.f32 %v334, %v415
    %v417 = vpop.f32.mrf.mxu0
    %418 = vmatprep.mubr.f32.mxu0 0.0
    %419 = vmatmul.mubr.f32.gmra.mxu0 %v54
    %v420 = vpop.f32.mrf.mxu0
    %v421 = vadd.f32 %v334, %v420
    %v422 = vpop.f32.mrf.mxu0
    %423 = vmatprep.mubr.f32.mxu0 0.0
    %424 = vmatmul.mubr.f32.gmra.mxu0 %v57
    %v425 = vpop.f32.mrf.mxu0
    %v426 = vadd.f32 %v334, %v425
    %v427 = vpop.f32.mrf.mxu0
    %428 = vmatprep.mubr.f32.mxu0 0.0
    %429 = vmatmul.mubr.f32.gmra.mxu0 %v60
    %v430 = vpop.f32.mrf.mxu0
    %v431 = vadd.f32 %v334, %v430
    %v432 = vpop.f32.mrf.mxu0
    %433 = vmatprep.mubr.f32.mxu0 0.0
    %434 = vmatmul.mubr.f32.gmra.mxu0 %v63
    %v435 = vpop.f32.mrf.mxu0
    %v436 = vadd.f32 %v334, %v435
    %v437 = vpop.f32.mrf.mxu0
    %438 = vmatprep.mubr.f32.mxu0 0.0
    %439 = vmatmul.mubr.f32.gmra.mxu0 %v66
    %v440 = vpop.f32.mrf.mxu0
    %v441 = vadd.f32 %v334, %v440
    %v442 = vpop.f32.mrf.mxu0
    %443 = vdwg.mxu0
    %v444 = vld [vmem:[%s2] sm:$0xff]
    %v445 = vld [vmem:[%s2 + $0x8] sm:$0xff]
    %v446 = vld [vmem:[%s2 + $0x10] sm:$0xff]
    %v447 = vld [vmem:[%s2 + $0x18] sm:$0xff]
    %s448 = scalar_lea.vmem %s2, 32
    %v449 = vld [vmem:[%s448] sm:$0xff]
    %v450 = vld [vmem:[%s448 + $0x8] sm:$0xff]
    %v451 = vld [vmem:[%s448 + $0x10] sm:$0xff]
    %v452 = vld [vmem:[%s448 + $0x18] sm:$0xff]
    %s453 = scalar_lea.vmem %s2, 64
    %v454 = vld [vmem:[%s453] sm:$0xff]
    %v455 = vld [vmem:[%s453 + $0x8] sm:$0xff]
    %v456 = vld [vmem:[%s453 + $0x10] sm:$0xff]
    %v457 = vld [vmem:[%s453 + $0x18] sm:$0xff]
    %s458 = scalar_lea.vmem %s4, 2
    %v459 = vld [vmem:[%s458] sm:$0x1]
    %vm460 = vcmask 261120
    %v462 = vsel %vm460, 0.0, 0
    %464 = vmatprep.subr.mxu0 0.0
    %465 = vmatpush1.msra.mxu0 0.0
    %466 = vmatprep.subr.mxu0 0.0
    %467 = vmatpush1.msra.mxu0 0.0
    %468 = vmatprep.subr.mxu0 0.0
    %469 = vmatpush1.msra.mxu0 0.0
    %470 = vmatprep.subr.mxu0 0.0
    %471 = vmatpush1.msra.mxu0 0.0
    %472 = vmatprep.subr.mxu0 0.0
    %473 = vmatpush1.msra.mxu0 0.0
    %474 = vmatprep.subr.mxu0 0.0
    %475 = vmatpush1.msra.mxu0 0.0
    %476 = vmatprep.subr.mxu0 0.0
    %477 = vmatpush1.msra.mxu0 0.0
    %478 = vmatprep.subr.mxu0 0.0
    %479 = vmatpush1.msra.mxu0 0.0
    %480 = vmatprep.subr.mxu0 0.0
    %481 = vmatpush1.msra.mxu0 0.0
    %482 = vmatprep.subr.mxu0 0.0
    %483 = vmatpush1.msra.mxu0 0.0
    %484 = vmatprep.subr.mxu0 0.0
    %485 = vmatpush1.msra.mxu0 0.0
    %486 = vmatprep.subr.mxu0 0.0
    %487 = vmatpush1.msra.mxu0 0.0
    %488 = vmatprep.subr.mxu0 0.0
    %489 = vmatpush1.msra.mxu0 %v447
    %490 = vmatprep.subr.mxu0 0.0
    %491 = vmatpush1.msra.mxu0 %v446
    %492 = vmatprep.subr.mxu0 0.0
    %493 = vmatpush1.msra.mxu0 %v445
    %494 = vmatprep.subr.mxu0 0.0
    %495 = vmatpush1.msra.mxu0 %v444
    %496 = vmatprep.subr.mxu0 0.0
    %497 = vmatpush2.msra.mxu0 0.0
    %498 = vmatprep.subr.mxu0 0.0
    %499 = vmatpush2.msra.mxu0 0.0
    %500 = vmatprep.subr.mxu0 0.0
    %501 = vmatpush2.msra.mxu0 0.0
    %502 = vmatprep.subr.mxu0 0.0
    %503 = vmatpush2.msra.mxu0 0.0
    %504 = vmatprep.subr.mxu0 0.0
    %505 = vmatpush2.msra.mxu0 0.0
    %506 = vmatprep.subr.mxu0 0.0
    %507 = vmatpush2.msra.mxu0 0.0
    %508 = vmatprep.subr.mxu0 0.0
    %509 = vmatpush2.msra.mxu0 0.0
    %510 = vmatprep.subr.mxu0 0.0
    %511 = vmatpush2.msra.mxu0 0.0
    %512 = vmatprep.subr.mxu0 0.0
    %513 = vmatpush2.msra.mxu0 0.0
    %514 = vmatprep.subr.mxu0 0.0
    %515 = vmatpush2.msra.mxu0 0.0
    %516 = vmatprep.subr.mxu0 0.0
    %517 = vmatpush2.msra.mxu0 0.0
    %518 = vmatprep.subr.mxu0 0.0
    %519 = vmatpush2.msra.mxu0 0.0
    %520 = vmatprep.subr.mxu0 0.0
    %521 = vmatpush2.msra.mxu0 0.0
    %522 = vmatprep.subr.mxu0 0.0
    %523 = vmatpush2.msra.mxu0 0.0
    %524 = vmatprep.subr.mxu0 0.0
    %525 = vmatpush2.msra.mxu0 0.0
    %526 = vmatprep.subr.mxu0 0.0
    %527 = vmatpush2.msra.mxu0 0.0
    %528 = vmatprep.mubr.f32.mxu0 0.0
    %529 = vmatmul.mubr.f32.gmra.mxu0 %v462
    %v530 = vpop.f32.mrf.mxu0
    %v531 = vadd.f32 0.0, %v530
    %v532 = vpop.f32.mrf.mxu0
    %533 = vdwg.mxu0
    %v534 = vadd.f32 %v191, %v531
    %v535 = vxor.u32 %v534, 2147483648
    %v536 = vmul.f32 %v535, 1.442695
    %v537 = vpow.pop %v536
    %v538 = vadd.f32 %v537, 1.0
    %v539 = vrcp.pop %v538
    %v540 = vmul.f32 1.0, %v539
    %541 = vmatprep.subr.mxu0 0.0
    %542 = vmatpush1.msra.mxu0 0.0
    %543 = vmatprep.subr.mxu0 0.0
    %544 = vmatpush1.msra.mxu0 0.0
    %545 = vmatprep.subr.mxu0 0.0
    %546 = vmatpush1.msra.mxu0 0.0
    %547 = vmatprep.subr.mxu0 0.0
    %548 = vmatpush1.msra.mxu0 0.0
    %549 = vmatprep.subr.mxu0 0.0
    %550 = vmatpush1.msra.mxu0 0.0
    %551 = vmatprep.subr.mxu0 0.0
    %552 = vmatpush1.msra.mxu0 0.0
    %553 = vmatprep.subr.mxu0 0.0
    %554 = vmatpush1.msra.mxu0 0.0
    %555 = vmatprep.subr.mxu0 0.0
    %556 = vmatpush1.msra.mxu0 0.0
    %557 = vmatprep.subr.mxu0 0.0
    %558 = vmatpush1.msra.mxu0 0.0
    %559 = vmatprep.subr.mxu0 0.0
    %560 = vmatpush1.msra.mxu0 0.0
    %561 = vmatprep.subr.mxu0 0.0
    %562 = vmatpush1.msra.mxu0 0.0
    %563 = vmatprep.subr.mxu0 0.0
    %564 = vmatpush1.msra.mxu0 0.0
    %565 = vmatprep.subr.mxu0 0.0
    %566 = vmatpush1.msra.mxu0 %v452
    %567 = vmatprep.subr.mxu0 0.0
    %568 = vmatpush1.msra.mxu0 %v451
    %569 = vmatprep.subr.mxu0 0.0
    %570 = vmatpush1.msra.mxu0 %v450
    %571 = vmatprep.subr.mxu0 0.0
    %572 = vmatpush1.msra.mxu0 %v449
    %573 = vmatprep.subr.mxu0 0.0
    %574 = vmatpush2.msra.mxu0 0.0
    %575 = vmatprep.subr.mxu0 0.0
    %576 = vmatpush2.msra.mxu0 0.0
    %577 = vmatprep.subr.mxu0 0.0
    %578 = vmatpush2.msra.mxu0 0.0
    %579 = vmatprep.subr.mxu0 0.0
    %580 = vmatpush2.msra.mxu0 0.0
    %581 = vmatprep.subr.mxu0 0.0
    %582 = vmatpush2.msra.mxu0 0.0
    %583 = vmatprep.subr.mxu0 0.0
    %584 = vmatpush2.msra.mxu0 0.0
    %585 = vmatprep.subr.mxu0 0.0
    %586 = vmatpush2.msra.mxu0 0.0
    %587 = vmatprep.subr.mxu0 0.0
    %588 = vmatpush2.msra.mxu0 0.0
    %589 = vmatprep.subr.mxu0 0.0
    %590 = vmatpush2.msra.mxu0 0.0
    %591 = vmatprep.subr.mxu0 0.0
    %592 = vmatpush2.msra.mxu0 0.0
    %593 = vmatprep.subr.mxu0 0.0
    %594 = vmatpush2.msra.mxu0 0.0
    %595 = vmatprep.subr.mxu0 0.0
    %596 = vmatpush2.msra.mxu0 0.0
    %597 = vmatprep.subr.mxu0 0.0
    %598 = vmatpush2.msra.mxu0 0.0
    %599 = vmatprep.subr.mxu0 0.0
    %600 = vmatpush2.msra.mxu0 0.0
    %601 = vmatprep.subr.mxu0 0.0
    %602 = vmatpush2.msra.mxu0 0.0
    %603 = vmatprep.subr.mxu0 0.0
    %604 = vmatpush2.msra.mxu0 0.0
    %605 = vmatprep.mubr.f32.mxu0 0.0
    %606 = vmatmul.mubr.f32.gmra.mxu0 %v462
    %v607 = vpop.f32.mrf.mxu0
    %v608 = vadd.f32 0.0, %v607
    %v609 = vpop.f32.mrf.mxu0
    %610 = vdwg.mxu0
    %v611 = vadd.f32 %v325, %v608
    %v612 = vxor.u32 %v611, 2147483648
    %v613 = vmul.f32 %v612, 1.442695
    %v614 = vpow.pop %v613
    %v615 = vadd.f32 %v614, 1.0
    %v616 = vrcp.pop %v615
    %v617 = vmul.f32 1.0, %v616
    %v619 = vlaneseq
    %v620 = vshrl.u32 %v619, 7
    %v621 = vsub.s32 0, %v620
    %v622 = vrot.slane %v459, %v621
    %624 = vmatprep.subr.mxu0 0.0
    %625 = vmatpush1.msra.mxu0 0.0
    %626 = vmatprep.subr.mxu0 0.0
    %627 = vmatpush1.msra.mxu0 0.0
    %628 = vmatprep.subr.mxu0 0.0
    %629 = vmatpush1.msra.mxu0 0.0
    %630 = vmatprep.subr.mxu0 0.0
    %631 = vmatpush1.msra.mxu0 0.0
    %632 = vmatprep.subr.mxu0 0.0
    %633 = vmatpush1.msra.mxu0 0.0
    %634 = vmatprep.subr.mxu0 0.0
    %635 = vmatpush1.msra.mxu0 0.0
    %636 = vmatprep.subr.mxu0 0.0
    %637 = vmatpush1.msra.mxu0 0.0
    %638 = vmatprep.subr.mxu0 0.0
    %639 = vmatpush1.msra.mxu0 0.0
    %640 = vmatprep.subr.mxu0 0.0
    %641 = vmatpush1.msra.mxu0 0.0
    %642 = vmatprep.subr.mxu0 0.0
    %643 = vmatpush1.msra.mxu0 0.0
    %644 = vmatprep.subr.mxu0 0.0
    %645 = vmatpush1.msra.mxu0 0.0
    %646 = vmatprep.subr.mxu0 0.0
    %647 = vmatpush1.msra.mxu0 0.0
    %648 = vmatprep.subr.mxu0 0.0
    %649 = vmatpush1.msra.mxu0 %v457
    %650 = vmatprep.subr.mxu0 0.0
    %651 = vmatpush1.msra.mxu0 %v456
    %652 = vmatprep.subr.mxu0 0.0
    %653 = vmatpush1.msra.mxu0 %v455
    %654 = vmatprep.subr.mxu0 0.0
    %655 = vmatpush1.msra.mxu0 %v454
    %656 = vmatprep.subr.mxu0 0.0
    %657 = vmatpush2.msra.mxu0 0.0
    %658 = vmatprep.subr.mxu0 0.0
    %659 = vmatpush2.msra.mxu0 0.0
    %660 = vmatprep.subr.mxu0 0.0
    %661 = vmatpush2.msra.mxu0 0.0
    %662 = vmatprep.subr.mxu0 0.0
    %663 = vmatpush2.msra.mxu0 0.0
    %664 = vmatprep.subr.mxu0 0.0
    %665 = vmatpush2.msra.mxu0 0.0
    %666 = vmatprep.subr.mxu0 0.0
    %667 = vmatpush2.msra.mxu0 0.0
    %668 = vmatprep.subr.mxu0 0.0
    %669 = vmatpush2.msra.mxu0 0.0
    %670 = vmatprep.subr.mxu0 0.0
    %671 = vmatpush2.msra.mxu0 0.0
    %672 = vmatprep.subr.mxu0 0.0
    %673 = vmatpush2.msra.mxu0 0.0
    %674 = vmatprep.subr.mxu0 0.0
    %675 = vmatpush2.msra.mxu0 0.0
    %676 = vmatprep.subr.mxu0 0.0
    %677 = vmatpush2.msra.mxu0 0.0
    %678 = vmatprep.subr.mxu0 0.0
    %679 = vmatpush2.msra.mxu0 0.0
    %680 = vmatprep.subr.mxu0 0.0
    %681 = vmatpush2.msra.mxu0 0.0
    %682 = vmatprep.subr.mxu0 0.0
    %683 = vmatpush2.msra.mxu0 0.0
    %684 = vmatprep.subr.mxu0 0.0
    %685 = vmatpush2.msra.mxu0 0.0
    %686 = vmatprep.subr.mxu0 0.0
    %687 = vmatpush2.msra.mxu0 0.0
    %688 = vmatprep.mubr.f32.mxu0 0.0
    %689 = vmatmul.mubr.f32.gmra.mxu0 %v462
    %v690 = vpop.f32.mrf.mxu0
    %v691 = vadd.f32 %v622, %v690
    %v692 = vpop.f32.mrf.mxu0
    %693 = vdwg.mxu0
    %v694 = vmul.f32 %v540, %v691
    %v695 = vadd.f32 %v441, %v694
    %v696 = vtanh.pop %v695
    %v697 = vsub.f32 1.0, %v617
    %v698 = vmul.f32 %v697, %v696
    %v699 = vmul.f32 %v617, 0.0
    %v700 = vadd.f32 %v698, %v699
    %v702 = vsel %vm460, %v700, 0
    %704 = vmatprep.subr.mxu0 0.0
    %705 = vmatpush1.msra.mxu0 0.0
    %706 = vmatprep.subr.mxu0 0.0
    %707 = vmatpush1.msra.mxu0 0.0
    %708 = vmatprep.subr.mxu0 0.0
    %709 = vmatpush1.msra.mxu0 0.0
    %710 = vmatprep.subr.mxu0 0.0
    %711 = vmatpush1.msra.mxu0 0.0
    %712 = vmatprep.subr.mxu0 0.0
    %713 = vmatpush1.msra.mxu0 0.0
    %714 = vmatprep.subr.mxu0 0.0
    %715 = vmatpush1.msra.mxu0 0.0
    %716 = vmatprep.subr.mxu0 0.0
    %717 = vmatpush1.msra.mxu0 0.0
    %718 = vmatprep.subr.mxu0 0.0
    %719 = vmatpush1.msra.mxu0 0.0
    %720 = vmatprep.subr.mxu0 0.0
    %721 = vmatpush1.msra.mxu0 0.0
    %722 = vmatprep.subr.mxu0 0.0
    %723 = vmatpush1.msra.mxu0 0.0
    %724 = vmatprep.subr.mxu0 0.0
    %725 = vmatpush1.msra.mxu0 0.0
    %726 = vmatprep.subr.mxu0 0.0
    %727 = vmatpush1.msra.mxu0 0.0
    %728 = vmatprep.subr.mxu0 0.0
    %729 = vmatpush1.msra.mxu0 %v447
    %730 = vmatprep.subr.mxu0 0.0
    %731 = vmatpush1.msra.mxu0 %v446
    %732 = vmatprep.subr.mxu0 0.0
    %733 = vmatpush1.msra.mxu0 %v445
    %734 = vmatprep.subr.mxu0 0.0
    %735 = vmatpush1.msra.mxu0 %v444
    %736 = vmatprep.subr.mxu0 0.0
    %737 = vmatpush2.msra.mxu0 0.0
    %738 = vmatprep.subr.mxu0 0.0
    %739 = vmatpush2.msra.mxu0 0.0
    %740 = vmatprep.subr.mxu0 0.0
    %741 = vmatpush2.msra.mxu0 0.0
    %742 = vmatprep.subr.mxu0 0.0
    %743 = vmatpush2.msra.mxu0 0.0
    %744 = vmatprep.subr.mxu0 0.0
    %745 = vmatpush2.msra.mxu0 0.0
    %746 = vmatprep.subr.mxu0 0.0
    %747 = vmatpush2.msra.mxu0 0.0
    %748 = vmatprep.subr.mxu0 0.0
    %749 = vmatpush2.msra.mxu0 0.0
    %750 = vmatprep.subr.mxu0 0.0
    %751 = vmatpush2.msra.mxu0 0.0
    %752 = vmatprep.subr.mxu0 0.0
    %753 = vmatpush2.msra.mxu0 0.0
    %754 = vmatprep.subr.mxu0 0.0
    %755 = vmatpush2.msra.mxu0 0.0
    %756 = vmatprep.subr.mxu0 0.0
    %757 = vmatpush2.msra.mxu0 0.0
    %758 = vmatprep.subr.mxu0 0.0
    %759 = vmatpush2.msra.mxu0 0.0
    %760 = vmatprep.subr.mxu0 0.0
    %761 = vmatpush2.msra.mxu0 0.0
    %762 = vmatprep.subr.mxu0 0.0
    %763 = vmatpush2.msra.mxu0 0.0
    %764 = vmatprep.subr.mxu0 0.0
    %765 = vmatpush2.msra.mxu0 0.0
    %766 = vmatprep.subr.mxu0 0.0
    %767 = vmatpush2.msra.mxu0 0.0
    %768 = vmatprep.mubr.f32.mxu0 0.0
    %769 = vmatmul.mubr.f32.gmra.mxu0 %v702
    %v770 = vpop.f32.mrf.mxu0
    %v771 = vadd.f32 0.0, %v770
    %v772 = vpop.f32.mrf.mxu0
    %773 = vdwg.mxu0
    %v774 = vadd.f32 %v190, %v771
    %v775 = vxor.u32 %v774, 2147483648
    %v776 = vmul.f32 %v775, 1.442695
    %v777 = vpow.pop %v776
    %v778 = vadd.f32 %v777, 1.0
    %v779 = vrcp.pop %v778
    %v780 = vmul.f32 1.0, %v779
    %781 = vmatprep.subr.mxu0 0.0
    %782 = vmatpush1.msra.mxu0 0.0
    %783 = vmatprep.subr.mxu0 0.0
    %784 = vmatpush1.msra.mxu0 0.0
    %785 = vmatprep.subr.mxu0 0.0
    %786 = vmatpush1.msra.mxu0 0.0
    %787 = vmatprep.subr.mxu0 0.0
    %788 = vmatpush1.msra.mxu0 0.0
    %789 = vmatprep.subr.mxu0 0.0
    %790 = vmatpush1.msra.mxu0 0.0
    %791 = vmatprep.subr.mxu0 0.0
    %792 = vmatpush1.msra.mxu0 0.0
    %793 = vmatprep.subr.mxu0 0.0
    %794 = vmatpush1.msra.mxu0 0.0
    %795 = vmatprep.subr.mxu0 0.0
    %796 = vmatpush1.msra.mxu0 0.0
    %797 = vmatprep.subr.mxu0 0.0
    %798 = vmatpush1.msra.mxu0 0.0
    %799 = vmatprep.subr.mxu0 0.0
    %800 = vmatpush1.msra.mxu0 0.0
    %801 = vmatprep.subr.mxu0 0.0
    %802 = vmatpush1.msra.mxu0 0.0
    %803 = vmatprep.subr.mxu0 0.0
    %804 = vmatpush1.msra.mxu0 0.0
    %805 = vmatprep.subr.mxu0 0.0
    %806 = vmatpush1.msra.mxu0 %v452
    %807 = vmatprep.subr.mxu0 0.0
    %808 = vmatpush1.msra.mxu0 %v451
    %809 = vmatprep.subr.mxu0 0.0
    %810 = vmatpush1.msra.mxu0 %v450
    %811 = vmatprep.subr.mxu0 0.0
    %812 = vmatpush1.msra.mxu0 %v449
    %813 = vmatprep.subr.mxu0 0.0
    %814 = vmatpush2.msra.mxu0 0.0
    %815 = vmatprep.subr.mxu0 0.0
    %816 = vmatpush2.msra.mxu0 0.0
    %817 = vmatprep.subr.mxu0 0.0
    %818 = vmatpush2.msra.mxu0 0.0
    %819 = vmatprep.subr.mxu0 0.0
    %820 = vmatpush2.msra.mxu0 0.0
    %821 = vmatprep.subr.mxu0 0.0
    %822 = vmatpush2.msra.mxu0 0.0
    %823 = vmatprep.subr.mxu0 0.0
    %824 = vmatpush2.msra.mxu0 0.0
    %825 = vmatprep.subr.mxu0 0.0
    %826 = vmatpush2.msra.mxu0 0.0
    %827 = vmatprep.subr.mxu0 0.0
    %828 = vmatpush2.msra.mxu0 0.0
    %829 = vmatprep.subr.mxu0 0.0
    %830 = vmatpush2.msra.mxu0 0.0
    %831 = vmatprep.subr.mxu0 0.0
    %832 = vmatpush2.msra.mxu0 0.0
    %833 = vmatprep.subr.mxu0 0.0
    %834 = vmatpush2.msra.mxu0 0.0
    %835 = vmatprep.subr.mxu0 0.0
    %836 = vmatpush2.msra.mxu0 0.0
    %837 = vmatprep.subr.mxu0 0.0
    %838 = vmatpush2.msra.mxu0 0.0
    %839 = vmatprep.subr.mxu0 0.0
    %840 = vmatpush2.msra.mxu0 0.0
    %841 = vmatprep.subr.mxu0 0.0
    %842 = vmatpush2.msra.mxu0 0.0
    %843 = vmatprep.subr.mxu0 0.0
    %844 = vmatpush2.msra.mxu0 0.0
    %845 = vmatprep.mubr.f32.mxu0 0.0
    %846 = vmatmul.mubr.f32.gmra.mxu0 %v702
    %v847 = vpop.f32.mrf.mxu0
    %v848 = vadd.f32 0.0, %v847
    %v849 = vpop.f32.mrf.mxu0
    %850 = vdwg.mxu0
    %v851 = vadd.f32 %v324, %v848
    %v852 = vxor.u32 %v851, 2147483648
    %v853 = vmul.f32 %v852, 1.442695
    %v854 = vpow.pop %v853
    %v855 = vadd.f32 %v854, 1.0
    %v856 = vrcp.pop %v855
    %v857 = vmul.f32 1.0, %v856
    %858 = vmatprep.subr.mxu0 0.0
    %859 = vmatpush1.msra.mxu0 0.0
    %860 = vmatprep.subr.mxu0 0.0
    %861 = vmatpush1.msra.mxu0 0.0
    %862 = vmatprep.subr.mxu0 0.0
    %863 = vmatpush1.msra.mxu0 0.0
    %864 = vmatprep.subr.mxu0 0.0
    %865 = vmatpush1.msra.mxu0 0.0
    %866 = vmatprep.subr.mxu0 0.0
    %867 = vmatpush1.msra.mxu0 0.0
    %868 = vmatprep.subr.mxu0 0.0
    %869 = vmatpush1.msra.mxu0 0.0
    %870 = vmatprep.subr.mxu0 0.0
    %871 = vmatpush1.msra.mxu0 0.0
    %872 = vmatprep.subr.mxu0 0.0
    %873 = vmatpush1.msra.mxu0 0.0
    %874 = vmatprep.subr.mxu0 0.0
    %875 = vmatpush1.msra.mxu0 0.0
    %876 = vmatprep.subr.mxu0 0.0
    %877 = vmatpush1.msra.mxu0 0.0
    %878 = vmatprep.subr.mxu0 0.0
    %879 = vmatpush1.msra.mxu0 0.0
    %880 = vmatprep.subr.mxu0 0.0
    %881 = vmatpush1.msra.mxu0 0.0
    %882 = vmatprep.subr.mxu0 0.0
    %883 = vmatpush1.msra.mxu0 %v457
    %884 = vmatprep.subr.mxu0 0.0
    %885 = vmatpush1.msra.mxu0 %v456
    %886 = vmatprep.subr.mxu0 0.0
    %887 = vmatpush1.msra.mxu0 %v455
    %888 = vmatprep.subr.mxu0 0.0
    %889 = vmatpush1.msra.mxu0 %v454
    %890 = vmatprep.subr.mxu0 0.0
    %891 = vmatpush2.msra.mxu0 0.0
    %892 = vmatprep.subr.mxu0 0.0
    %893 = vmatpush2.msra.mxu0 0.0
    %894 = vmatprep.subr.mxu0 0.0
    %895 = vmatpush2.msra.mxu0 0.0
    %896 = vmatprep.subr.mxu0 0.0
    %897 = vmatpush2.msra.mxu0 0.0
    %898 = vmatprep.subr.mxu0 0.0
    %899 = vmatpush2.msra.mxu0 0.0
    %900 = vmatprep.subr.mxu0 0.0
    %901 = vmatpush2.msra.mxu0 0.0
    %902 = vmatprep.subr.mxu0 0.0
    %903 = vmatpush2.msra.mxu0 0.0
    %904 = vmatprep.subr.mxu0 0.0
    %905 = vmatpush2.msra.mxu0 0.0
    %906 = vmatprep.subr.mxu0 0.0
    %907 = vmatpush2.msra.mxu0 0.0
    %908 = vmatprep.subr.mxu0 0.0
    %909 = vmatpush2.msra.mxu0 0.0
    %910 = vmatprep.subr.mxu0 0.0
    %911 = vmatpush2.msra.mxu0 0.0
    %912 = vmatprep.subr.mxu0 0.0
    %913 = vmatpush2.msra.mxu0 0.0
    %914 = vmatprep.subr.mxu0 0.0
    %915 = vmatpush2.msra.mxu0 0.0
    %916 = vmatprep.subr.mxu0 0.0
    %917 = vmatpush2.msra.mxu0 0.0
    %918 = vmatprep.subr.mxu0 0.0
    %919 = vmatpush2.msra.mxu0 0.0
    %920 = vmatprep.subr.mxu0 0.0
    %921 = vmatpush2.msra.mxu0 0.0
    %922 = vmatprep.mubr.f32.mxu0 0.0
    %923 = vmatmul.mubr.f32.gmra.mxu0 %v702
    %v924 = vpop.f32.mrf.mxu0
    %v925 = vadd.f32 %v622, %v924
    %v926 = vpop.f32.mrf.mxu0
    %927 = vdwg.mxu0
    %v928 = vmul.f32 %v780, %v925
    %v929 = vadd.f32 %v436, %v928
    %v930 = vtanh.pop %v929
    %v931 = vsub.f32 1.0, %v857
    %v932 = vmul.f32 %v931, %v930
    %v933 = vmul.f32 %v857, %v700
    %v934 = vadd.f32 %v932, %v933
    %v936 = vsel %vm460, %v934, 0
    %938 = vmatprep.subr.mxu0 0.0
    %939 = vmatpush1.msra.mxu0 0.0
    %940 = vmatprep.subr.mxu0 0.0
    %941 = vmatpush1.msra.mxu0 0.0
    %942 = vmatprep.subr.mxu0 0.0
    %943 = vmatpush1.msra.mxu0 0.0
    %944 = vmatprep.subr.mxu0 0.0
    %945 = vmatpush1.msra.mxu0 0.0
    %946 = vmatprep.subr.mxu0 0.0
    %947 = vmatpush1.msra.mxu0 0.0
    %948 = vmatprep.subr.mxu0 0.0
    %949 = vmatpush1.msra.mxu0 0.0
    %950 = vmatprep.subr.mxu0 0.0
    %951 = vmatpush1.msra.mxu0 0.0
    %952 = vmatprep.subr.mxu0 0.0
    %953 = vmatpush1.msra.mxu0 0.0
    %954 = vmatprep.subr.mxu0 0.0
    %955 = vmatpush1.msra.mxu0 0.0
    %956 = vmatprep.subr.mxu0 0.0
    %957 = vmatpush1.msra.mxu0 0.0
    %958 = vmatprep.subr.mxu0 0.0
    %959 = vmatpush1.msra.mxu0 0.0
    %960 = vmatprep.subr.mxu0 0.0
    %961 = vmatpush1.msra.mxu0 0.0
    %962 = vmatprep.subr.mxu0 0.0
    %963 = vmatpush1.msra.mxu0 %v447
    %964 = vmatprep.subr.mxu0 0.0
    %965 = vmatpush1.msra.mxu0 %v446
    %966 = vmatprep.subr.mxu0 0.0
    %967 = vmatpush1.msra.mxu0 %v445
    %968 = vmatprep.subr.mxu0 0.0
    %969 = vmatpush1.msra.mxu0 %v444
    %970 = vmatprep.subr.mxu0 0.0
    %971 = vmatpush2.msra.mxu0 0.0
    %972 = vmatprep.subr.mxu0 0.0
    %973 = vmatpush2.msra.mxu0 0.0
    %974 = vmatprep.subr.mxu0 0.0
    %975 = vmatpush2.msra.mxu0 0.0
    %976 = vmatprep.subr.mxu0 0.0
    %977 = vmatpush2.msra.mxu0 0.0
    %978 = vmatprep.subr.mxu0 0.0
    %979 = vmatpush2.msra.mxu0 0.0
    %980 = vmatprep.subr.mxu0 0.0
    %981 = vmatpush2.msra.mxu0 0.0
    %982 = vmatprep.subr.mxu0 0.0
    %983 = vmatpush2.msra.mxu0 0.0
    %984 = vmatprep.subr.mxu0 0.0
    %985 = vmatpush2.msra.mxu0 0.0
    %986 = vmatprep.subr.mxu0 0.0
    %987 = vmatpush2.msra.mxu0 0.0
    %988 = vmatprep.subr.mxu0 0.0
    %989 = vmatpush2.msra.mxu0 0.0
    %990 = vmatprep.subr.mxu0 0.0
    %991 = vmatpush2.msra.mxu0 0.0
    %992 = vmatprep.subr.mxu0 0.0
    %993 = vmatpush2.msra.mxu0 0.0
    %994 = vmatprep.subr.mxu0 0.0
    %995 = vmatpush2.msra.mxu0 0.0
    %996 = vmatprep.subr.mxu0 0.0
    %997 = vmatpush2.msra.mxu0 0.0
    %998 = vmatprep.subr.mxu0 0.0
    %999 = vmatpush2.msra.mxu0 0.0
    %1000 = vmatprep.subr.mxu0 0.0
    %1001 = vmatpush2.msra.mxu0 0.0
    %1002 = vmatprep.mubr.f32.mxu0 0.0
    %1003 = vmatmul.mubr.f32.gmra.mxu0 %v936
    %v1004 = vpop.f32.mrf.mxu0
    %v1005 = vadd.f32 0.0, %v1004
    %v1006 = vpop.f32.mrf.mxu0
    %1007 = vdwg.mxu0
    %v1008 = vadd.f32 %v189, %v1005
    %v1009 = vxor.u32 %v1008, 2147483648
    %v1010 = vmul.f32 %v1009, 1.442695
    %v1011 = vpow.pop %v1010
    %v1012 = vadd.f32 %v1011, 1.0
    %v1013 = vrcp.pop %v1012
    %v1014 = vmul.f32 1.0, %v1013
    %1015 = vmatprep.subr.mxu0 0.0
    %1016 = vmatpush1.msra.mxu0 0.0
    %1017 = vmatprep.subr.mxu0 0.0
    %1018 = vmatpush1.msra.mxu0 0.0
    %1019 = vmatprep.subr.mxu0 0.0
    %1020 = vmatpush1.msra.mxu0 0.0
    %1021 = vmatprep.subr.mxu0 0.0
    %1022 = vmatpush1.msra.mxu0 0.0
    %1023 = vmatprep.subr.mxu0 0.0
    %1024 = vmatpush1.msra.mxu0 0.0
    %1025 = vmatprep.subr.mxu0 0.0
    %1026 = vmatpush1.msra.mxu0 0.0
    %1027 = vmatprep.subr.mxu0 0.0
    %1028 = vmatpush1.msra.mxu0 0.0
    %1029 = vmatprep.subr.mxu0 0.0
    %1030 = vmatpush1.msra.mxu0 0.0
    %1031 = vmatprep.subr.mxu0 0.0
    %1032 = vmatpush1.msra.mxu0 0.0
    %1033 = vmatprep.subr.mxu0 0.0
    %1034 = vmatpush1.msra.mxu0 0.0
    %1035 = vmatprep.subr.mxu0 0.0
    %1036 = vmatpush1.msra.mxu0 0.0
    %1037 = vmatprep.subr.mxu0 0.0
    %1038 = vmatpush1.msra.mxu0 0.0
    %1039 = vmatprep.subr.mxu0 0.0
    %1040 = vmatpush1.msra.mxu0 %v452
    %1041 = vmatprep.subr.mxu0 0.0
    %1042 = vmatpush1.msra.mxu0 %v451
    %1043 = vmatprep.subr.mxu0 0.0
    %1044 = vmatpush1.msra.mxu0 %v450
    %1045 = vmatprep.subr.mxu0 0.0
    %1046 = vmatpush1.msra.mxu0 %v449
    %1047 = vmatprep.subr.mxu0 0.0
    %1048 = vmatpush2.msra.mxu0 0.0
    %1049 = vmatprep.subr.mxu0 0.0
    %1050 = vmatpush2.msra.mxu0 0.0
    %1051 = vmatprep.subr.mxu0 0.0
    %1052 = vmatpush2.msra.mxu0 0.0
    %1053 = vmatprep.subr.mxu0 0.0
    %1054 = vmatpush2.msra.mxu0 0.0
    %1055 = vmatprep.subr.mxu0 0.0
    %1056 = vmatpush2.msra.mxu0 0.0
    %1057 = vmatprep.subr.mxu0 0.0
    %1058 = vmatpush2.msra.mxu0 0.0
    %1059 = vmatprep.subr.mxu0 0.0
    %1060 = vmatpush2.msra.mxu0 0.0
    %1061 = vmatprep.subr.mxu0 0.0
    %1062 = vmatpush2.msra.mxu0 0.0
    %1063 = vmatprep.subr.mxu0 0.0
    %1064 = vmatpush2.msra.mxu0 0.0
    %1065 = vmatprep.subr.mxu0 0.0
    %1066 = vmatpush2.msra.mxu0 0.0
    %1067 = vmatprep.subr.mxu0 0.0
    %1068 = vmatpush2.msra.mxu0 0.0
    %1069 = vmatprep.subr.mxu0 0.0
    %1070 = vmatpush2.msra.mxu0 0.0
    %1071 = vmatprep.subr.mxu0 0.0
    %1072 = vmatpush2.msra.mxu0 0.0
    %1073 = vmatprep.subr.mxu0 0.0
    %1074 = vmatpush2.msra.mxu0 0.0
    %1075 = vmatprep.subr.mxu0 0.0
    %1076 = vmatpush2.msra.mxu0 0.0
    %1077 = vmatprep.subr.mxu0 0.0
    %1078 = vmatpush2.msra.mxu0 0.0
    %1079 = vmatprep.mubr.f32.mxu0 0.0
    %1080 = vmatmul.mubr.f32.gmra.mxu0 %v936
    %v1081 = vpop.f32.mrf.mxu0
    %v1082 = vadd.f32 0.0, %v1081
    %v1083 = vpop.f32.mrf.mxu0
    %1084 = vdwg.mxu0
    %v1085 = vadd.f32 %v323, %v1082
    %v1086 = vxor.u32 %v1085, 2147483648
    %v1087 = vmul.f32 %v1086, 1.442695
    %v1088 = vpow.pop %v1087
    %v1089 = vadd.f32 %v1088, 1.0
    %v1090 = vrcp.pop %v1089
    %v1091 = vmul.f32 1.0, %v1090
    %1092 = vmatprep.subr.mxu0 0.0
    %1093 = vmatpush1.msra.mxu0 0.0
    %1094 = vmatprep.subr.mxu0 0.0
    %1095 = vmatpush1.msra.mxu0 0.0
    %1096 = vmatprep.subr.mxu0 0.0
    %1097 = vmatpush1.msra.mxu0 0.0
    %1098 = vmatprep.subr.mxu0 0.0
    %1099 = vmatpush1.msra.mxu0 0.0
    %1100 = vmatprep.subr.mxu0 0.0
    %1101 = vmatpush1.msra.mxu0 0.0
    %1102 = vmatprep.subr.mxu0 0.0
    %1103 = vmatpush1.msra.mxu0 0.0
    %1104 = vmatprep.subr.mxu0 0.0
    %1105 = vmatpush1.msra.mxu0 0.0
    %1106 = vmatprep.subr.mxu0 0.0
    %1107 = vmatpush1.msra.mxu0 0.0
    %1108 = vmatprep.subr.mxu0 0.0
    %1109 = vmatpush1.msra.mxu0 0.0
    %1110 = vmatprep.subr.mxu0 0.0
    %1111 = vmatpush1.msra.mxu0 0.0
    %1112 = vmatprep.subr.mxu0 0.0
    %1113 = vmatpush1.msra.mxu0 0.0
    %1114 = vmatprep.subr.mxu0 0.0
    %1115 = vmatpush1.msra.mxu0 0.0
    %1116 = vmatprep.subr.mxu0 0.0
    %1117 = vmatpush1.msra.mxu0 %v457
    %1118 = vmatprep.subr.mxu0 0.0
    %1119 = vmatpush1.msra.mxu0 %v456
    %1120 = vmatprep.subr.mxu0 0.0
    %1121 = vmatpush1.msra.mxu0 %v455
    %1122 = vmatprep.subr.mxu0 0.0
    %1123 = vmatpush1.msra.mxu0 %v454
    %1124 = vmatprep.subr.mxu0 0.0
    %1125 = vmatpush2.msra.mxu0 0.0
    %1126 = vmatprep.subr.mxu0 0.0
    %1127 = vmatpush2.msra.mxu0 0.0
    %1128 = vmatprep.subr.mxu0 0.0
    %1129 = vmatpush2.msra.mxu0 0.0
    %1130 = vmatprep.subr.mxu0 0.0
    %1131 = vmatpush2.msra.mxu0 0.0
    %1132 = vmatprep.subr.mxu0 0.0
    %1133 = vmatpush2.msra.mxu0 0.0
    %1134 = vmatprep.subr.mxu0 0.0
    %1135 = vmatpush2.msra.mxu0 0.0
    %1136 = vmatprep.subr.mxu0 0.0
    %1137 = vmatpush2.msra.mxu0 0.0
    %1138 = vmatprep.subr.mxu0 0.0
    %1139 = vmatpush2.msra.mxu0 0.0
    %1140 = vmatprep.subr.mxu0 0.0
    %1141 = vmatpush2.msra.mxu0 0.0
    %1142 = vmatprep.subr.mxu0 0.0
    %1143 = vmatpush2.msra.mxu0 0.0
    %1144 = vmatprep.subr.mxu0 0.0
    %1145 = vmatpush2.msra.mxu0 0.0
    %1146 = vmatprep.subr.mxu0 0.0
    %1147 = vmatpush2.msra.mxu0 0.0
    %1148 = vmatprep.subr.mxu0 0.0
    %1149 = vmatpush2.msra.mxu0 0.0
    %1150 = vmatprep.subr.mxu0 0.0
    %1151 = vmatpush2.msra.mxu0 0.0
    %1152 = vmatprep.subr.mxu0 0.0
    %1153 = vmatpush2.msra.mxu0 0.0
    %1154 = vmatprep.subr.mxu0 0.0
    %1155 = vmatpush2.msra.mxu0 0.0
    %1156 = vmatprep.mubr.f32.mxu0 0.0
    %1157 = vmatmul.mubr.f32.gmra.mxu0 %v936
    %v1158 = vpop.f32.mrf.mxu0
    %v1159 = vadd.f32 %v622, %v1158
    %v1160 = vpop.f32.mrf.mxu0
    %1161 = vdwg.mxu0
    %v1162 = vmul.f32 %v1014, %v1159
    %v1163 = vadd.f32 %v431, %v1162
    %v1164 = vtanh.pop %v1163
    %v1165 = vsub.f32 1.0, %v1091
    %v1166 = vmul.f32 %v1165, %v1164
    %v1167 = vmul.f32 %v1091, %v934
    %v1168 = vadd.f32 %v1166, %v1167
    %v1170 = vsel %vm460, %v1168, 0
    %1172 = vmatprep.subr.mxu0 0.0
    %1173 = vmatpush1.msra.mxu0 0.0
    %1174 = vmatprep.subr.mxu0 0.0
    %1175 = vmatpush1.msra.mxu0 0.0
    %1176 = vmatprep.subr.mxu0 0.0
    %1177 = vmatpush1.msra.mxu0 0.0
    %1178 = vmatprep.subr.mxu0 0.0
    %1179 = vmatpush1.msra.mxu0 0.0
    %1180 = vmatprep.subr.mxu0 0.0
    %1181 = vmatpush1.msra.mxu0 0.0
    %1182 = vmatprep.subr.mxu0 0.0
    %1183 = vmatpush1.msra.mxu0 0.0
    %1184 = vmatprep.subr.mxu0 0.0
    %1185 = vmatpush1.msra.mxu0 0.0
    %1186 = vmatprep.subr.mxu0 0.0
    %1187 = vmatpush1.msra.mxu0 0.0
    %1188 = vmatprep.subr.mxu0 0.0
    %1189 = vmatpush1.msra.mxu0 0.0
    %1190 = vmatprep.subr.mxu0 0.0
    %1191 = vmatpush1.msra.mxu0 0.0
    %1192 = vmatprep.subr.mxu0 0.0
    %1193 = vmatpush1.msra.mxu0 0.0
    %1194 = vmatprep.subr.mxu0 0.0
    %1195 = vmatpush1.msra.mxu0 0.0
    %1196 = vmatprep.subr.mxu0 0.0
    %1197 = vmatpush1.msra.mxu0 %v447
    %1198 = vmatprep.subr.mxu0 0.0
    %1199 = vmatpush1.msra.mxu0 %v446
    %1200 = vmatprep.subr.mxu0 0.0
    %1201 = vmatpush1.msra.mxu0 %v445
    %1202 = vmatprep.subr.mxu0 0.0
    %1203 = vmatpush1.msra.mxu0 %v444
    %1204 = vmatprep.subr.mxu0 0.0
    %1205 = vmatpush2.msra.mxu0 0.0
    %1206 = vmatprep.subr.mxu0 0.0
    %1207 = vmatpush2.msra.mxu0 0.0
    %1208 = vmatprep.subr.mxu0 0.0
    %1209 = vmatpush2.msra.mxu0 0.0
    %1210 = vmatprep.subr.mxu0 0.0
    %1211 = vmatpush2.msra.mxu0 0.0
    %1212 = vmatprep.subr.mxu0 0.0
    %1213 = vmatpush2.msra.mxu0 0.0
    %1214 = vmatprep.subr.mxu0 0.0
    %1215 = vmatpush2.msra.mxu0 0.0
    %1216 = vmatprep.subr.mxu0 0.0
    %1217 = vmatpush2.msra.mxu0 0.0
    %1218 = vmatprep.subr.mxu0 0.0
    %1219 = vmatpush2.msra.mxu0 0.0
    %1220 = vmatprep.subr.mxu0 0.0
    %1221 = vmatpush2.msra.mxu0 0.0
    %1222 = vmatprep.subr.mxu0 0.0
    %1223 = vmatpush2.msra.mxu0 0.0
    %1224 = vmatprep.subr.mxu0 0.0
    %1225 = vmatpush2.msra.mxu0 0.0
    %1226 = vmatprep.subr.mxu0 0.0
    %1227 = vmatpush2.msra.mxu0 0.0
    %1228 = vmatprep.subr.mxu0 0.0
    %1229 = vmatpush2.msra.mxu0 0.0
    %1230 = vmatprep.subr.mxu0 0.0
    %1231 = vmatpush2.msra.mxu0 0.0
    %1232 = vmatprep.subr.mxu0 0.0
    %1233 = vmatpush2.msra.mxu0 0.0
    %1234 = vmatprep.subr.mxu0 0.0
    %1235 = vmatpush2.msra.mxu0 0.0
    %1236 = vmatprep.mubr.f32.mxu0 0.0
    %1237 = vmatmul.mubr.f32.gmra.mxu0 %v1170
    %v1238 = vpop.f32.mrf.mxu0
    %v1239 = vadd.f32 0.0, %v1238
    %v1240 = vpop.f32.mrf.mxu0
    %1241 = vdwg.mxu0
    %v1242 = vadd.f32 %v188, %v1239
    %v1243 = vxor.u32 %v1242, 2147483648
    %v1244 = vmul.f32 %v1243, 1.442695
    %v1245 = vpow.pop %v1244
    %v1246 = vadd.f32 %v1245, 1.0
    %v1247 = vrcp.pop %v1246
    %v1248 = vmul.f32 1.0, %v1247
    %1249 = vmatprep.subr.mxu0 0.0
    %1250 = vmatpush1.msra.mxu0 0.0
    %1251 = vmatprep.subr.mxu0 0.0
    %1252 = vmatpush1.msra.mxu0 0.0
    %1253 = vmatprep.subr.mxu0 0.0
    %1254 = vmatpush1.msra.mxu0 0.0
    %1255 = vmatprep.subr.mxu0 0.0
    %1256 = vmatpush1.msra.mxu0 0.0
    %1257 = vmatprep.subr.mxu0 0.0
    %1258 = vmatpush1.msra.mxu0 0.0
    %1259 = vmatprep.subr.mxu0 0.0
    %1260 = vmatpush1.msra.mxu0 0.0
    %1261 = vmatprep.subr.mxu0 0.0
    %1262 = vmatpush1.msra.mxu0 0.0
    %1263 = vmatprep.subr.mxu0 0.0
    %1264 = vmatpush1.msra.mxu0 0.0
    %1265 = vmatprep.subr.mxu0 0.0
    %1266 = vmatpush1.msra.mxu0 0.0
    %1267 = vmatprep.subr.mxu0 0.0
    %1268 = vmatpush1.msra.mxu0 0.0
    %1269 = vmatprep.subr.mxu0 0.0
    %1270 = vmatpush1.msra.mxu0 0.0
    %1271 = vmatprep.subr.mxu0 0.0
    %1272 = vmatpush1.msra.mxu0 0.0
    %1273 = vmatprep.subr.mxu0 0.0
    %1274 = vmatpush1.msra.mxu0 %v452
    %1275 = vmatprep.subr.mxu0 0.0
    %1276 = vmatpush1.msra.mxu0 %v451
    %1277 = vmatprep.subr.mxu0 0.0
    %1278 = vmatpush1.msra.mxu0 %v450
    %1279 = vmatprep.subr.mxu0 0.0
    %1280 = vmatpush1.msra.mxu0 %v449
    %1281 = vmatprep.subr.mxu0 0.0
    %1282 = vmatpush2.msra.mxu0 0.0
    %1283 = vmatprep.subr.mxu0 0.0
    %1284 = vmatpush2.msra.mxu0 0.0
    %1285 = vmatprep.subr.mxu0 0.0
    %1286 = vmatpush2.msra.mxu0 0.0
    %1287 = vmatprep.subr.mxu0 0.0
    %1288 = vmatpush2.msra.mxu0 0.0
    %1289 = vmatprep.subr.mxu0 0.0
    %1290 = vmatpush2.msra.mxu0 0.0
    %1291 = vmatprep.subr.mxu0 0.0
    %1292 = vmatpush2.msra.mxu0 0.0
    %1293 = vmatprep.subr.mxu0 0.0
    %1294 = vmatpush2.msra.mxu0 0.0
    %1295 = vmatprep.subr.mxu0 0.0
    %1296 = vmatpush2.msra.mxu0 0.0
    %1297 = vmatprep.subr.mxu0 0.0
    %1298 = vmatpush2.msra.mxu0 0.0
    %1299 = vmatprep.subr.mxu0 0.0
    %1300 = vmatpush2.msra.mxu0 0.0
    %1301 = vmatprep.subr.mxu0 0.0
    %1302 = vmatpush2.msra.mxu0 0.0
    %1303 = vmatprep.subr.mxu0 0.0
    %1304 = vmatpush2.msra.mxu0 0.0
    %1305 = vmatprep.subr.mxu0 0.0
    %1306 = vmatpush2.msra.mxu0 0.0
    %1307 = vmatprep.subr.mxu0 0.0
    %1308 = vmatpush2.msra.mxu0 0.0
    %1309 = vmatprep.subr.mxu0 0.0
    %1310 = vmatpush2.msra.mxu0 0.0
    %1311 = vmatprep.subr.mxu0 0.0
    %1312 = vmatpush2.msra.mxu0 0.0
    %1313 = vmatprep.mubr.f32.mxu0 0.0
    %1314 = vmatmul.mubr.f32.gmra.mxu0 %v1170
    %v1315 = vpop.f32.mrf.mxu0
    %v1316 = vadd.f32 0.0, %v1315
    %v1317 = vpop.f32.mrf.mxu0
    %1318 = vdwg.mxu0
    %v1319 = vadd.f32 %v322, %v1316
    %v1320 = vxor.u32 %v1319, 2147483648
    %v1321 = vmul.f32 %v1320, 1.442695
    %v1322 = vpow.pop %v1321
    %v1323 = vadd.f32 %v1322, 1.0
    %v1324 = vrcp.pop %v1323
    %v1325 = vmul.f32 1.0, %v1324
    %1326 = vmatprep.subr.mxu0 0.0
    %1327 = vmatpush1.msra.mxu0 0.0
    %1328 = vmatprep.subr.mxu0 0.0
    %1329 = vmatpush1.msra.mxu0 0.0
    %1330 = vmatprep.subr.mxu0 0.0
    %1331 = vmatpush1.msra.mxu0 0.0
    %1332 = vmatprep.subr.mxu0 0.0
    %1333 = vmatpush1.msra.mxu0 0.0
    %1334 = vmatprep.subr.mxu0 0.0
    %1335 = vmatpush1.msra.mxu0 0.0
    %1336 = vmatprep.subr.mxu0 0.0
    %1337 = vmatpush1.msra.mxu0 0.0
    %1338 = vmatprep.subr.mxu0 0.0
    %1339 = vmatpush1.msra.mxu0 0.0
    %1340 = vmatprep.subr.mxu0 0.0
    %1341 = vmatpush1.msra.mxu0 0.0
    %1342 = vmatprep.subr.mxu0 0.0
    %1343 = vmatpush1.msra.mxu0 0.0
    %1344 = vmatprep.subr.mxu0 0.0
    %1345 = vmatpush1.msra.mxu0 0.0
    %1346 = vmatprep.subr.mxu0 0.0
    %1347 = vmatpush1.msra.mxu0 0.0
    %1348 = vmatprep.subr.mxu0 0.0
    %1349 = vmatpush1.msra.mxu0 0.0
    %1350 = vmatprep.subr.mxu0 0.0
    %1351 = vmatpush1.msra.mxu0 %v457
    %1352 = vmatprep.subr.mxu0 0.0
    %1353 = vmatpush1.msra.mxu0 %v456
    %1354 = vmatprep.subr.mxu0 0.0
    %1355 = vmatpush1.msra.mxu0 %v455
    %1356 = vmatprep.subr.mxu0 0.0
    %1357 = vmatpush1.msra.mxu0 %v454
    %1358 = vmatprep.subr.mxu0 0.0
    %1359 = vmatpush2.msra.mxu0 0.0
    %1360 = vmatprep.subr.mxu0 0.0
    %1361 = vmatpush2.msra.mxu0 0.0
    %1362 = vmatprep.subr.mxu0 0.0
    %1363 = vmatpush2.msra.mxu0 0.0
    %1364 = vmatprep.subr.mxu0 0.0
    %1365 = vmatpush2.msra.mxu0 0.0
    %1366 = vmatprep.subr.mxu0 0.0
    %1367 = vmatpush2.msra.mxu0 0.0
    %1368 = vmatprep.subr.mxu0 0.0
    %1369 = vmatpush2.msra.mxu0 0.0
    %1370 = vmatprep.subr.mxu0 0.0
    %1371 = vmatpush2.msra.mxu0 0.0
    %1372 = vmatprep.subr.mxu0 0.0
    %1373 = vmatpush2.msra.mxu0 0.0
    %1374 = vmatprep.subr.mxu0 0.0
    %1375 = vmatpush2.msra.mxu0 0.0
    %1376 = vmatprep.subr.mxu0 0.0
    %1377 = vmatpush2.msra.mxu0 0.0
    %1378 = vmatprep.subr.mxu0 0.0
    %1379 = vmatpush2.msra.mxu0 0.0
    %1380 = vmatprep.subr.mxu0 0.0
    %1381 = vmatpush2.msra.mxu0 0.0
    %1382 = vmatprep.subr.mxu0 0.0
    %1383 = vmatpush2.msra.mxu0 0.0
    %1384 = vmatprep.subr.mxu0 0.0
    %1385 = vmatpush2.msra.mxu0 0.0
    %1386 = vmatprep.subr.mxu0 0.0
    %1387 = vmatpush2.msra.mxu0 0.0
    %1388 = vmatprep.subr.mxu0 0.0
    %1389 = vmatpush2.msra.mxu0 0.0
    %1390 = vmatprep.mubr.f32.mxu0 0.0
    %1391 = vmatmul.mubr.f32.gmra.mxu0 %v1170
    %v1392 = vpop.f32.mrf.mxu0
    %v1393 = vadd.f32 %v622, %v1392
    %v1394 = vpop.f32.mrf.mxu0
    %1395 = vdwg.mxu0
    %v1396 = vmul.f32 %v1248, %v1393
    %v1397 = vadd.f32 %v426, %v1396
    %v1398 = vtanh.pop %v1397
    %v1399 = vsub.f32 1.0, %v1325
    %v1400 = vmul.f32 %v1399, %v1398
    %v1401 = vmul.f32 %v1325, %v1168
    %v1402 = vadd.f32 %v1400, %v1401
    %v1404 = vsel %vm460, %v1402, 0
    %1406 = vmatprep.subr.mxu0 0.0
    %1407 = vmatpush1.msra.mxu0 0.0
    %1408 = vmatprep.subr.mxu0 0.0
    %1409 = vmatpush1.msra.mxu0 0.0
    %1410 = vmatprep.subr.mxu0 0.0
    %1411 = vmatpush1.msra.mxu0 0.0
    %1412 = vmatprep.subr.mxu0 0.0
    %1413 = vmatpush1.msra.mxu0 0.0
    %1414 = vmatprep.subr.mxu0 0.0
    %1415 = vmatpush1.msra.mxu0 0.0
    %1416 = vmatprep.subr.mxu0 0.0
    %1417 = vmatpush1.msra.mxu0 0.0
    %1418 = vmatprep.subr.mxu0 0.0
    %1419 = vmatpush1.msra.mxu0 0.0
    %1420 = vmatprep.subr.mxu0 0.0
    %1421 = vmatpush1.msra.mxu0 0.0
    %1422 = vmatprep.subr.mxu0 0.0
    %1423 = vmatpush1.msra.mxu0 0.0
    %1424 = vmatprep.subr.mxu0 0.0
    %1425 = vmatpush1.msra.mxu0 0.0
    %1426 = vmatprep.subr.mxu0 0.0
    %1427 = vmatpush1.msra.mxu0 0.0
    %1428 = vmatprep.subr.mxu0 0.0
    %1429 = vmatpush1.msra.mxu0 0.0
    %1430 = vmatprep.subr.mxu0 0.0
    %1431 = vmatpush1.msra.mxu0 %v447
    %1432 = vmatprep.subr.mxu0 0.0
    %1433 = vmatpush1.msra.mxu0 %v446
    %1434 = vmatprep.subr.mxu0 0.0
    %1435 = vmatpush1.msra.mxu0 %v445
    %1436 = vmatprep.subr.mxu0 0.0
    %1437 = vmatpush1.msra.mxu0 %v444
    %1438 = vmatprep.subr.mxu0 0.0
    %1439 = vmatpush2.msra.mxu0 0.0
    %1440 = vmatprep.subr.mxu0 0.0
    %1441 = vmatpush2.msra.mxu0 0.0
    %1442 = vmatprep.subr.mxu0 0.0
    %1443 = vmatpush2.msra.mxu0 0.0
    %1444 = vmatprep.subr.mxu0 0.0
    %1445 = vmatpush2.msra.mxu0 0.0
    %1446 = vmatprep.subr.mxu0 0.0
    %1447 = vmatpush2.msra.mxu0 0.0
    %1448 = vmatprep.subr.mxu0 0.0
    %1449 = vmatpush2.msra.mxu0 0.0
    %1450 = vmatprep.subr.mxu0 0.0
    %1451 = vmatpush2.msra.mxu0 0.0
    %1452 = vmatprep.subr.mxu0 0.0
    %1453 = vmatpush2.msra.mxu0 0.0
    %1454 = vmatprep.subr.mxu0 0.0
    %1455 = vmatpush2.msra.mxu0 0.0
    %1456 = vmatprep.subr.mxu0 0.0
    %1457 = vmatpush2.msra.mxu0 0.0
    %1458 = vmatprep.subr.mxu0 0.0
    %1459 = vmatpush2.msra.mxu0 0.0
    %1460 = vmatprep.subr.mxu0 0.0
    %1461 = vmatpush2.msra.mxu0 0.0
    %1462 = vmatprep.subr.mxu0 0.0
    %1463 = vmatpush2.msra.mxu0 0.0
    %1464 = vmatprep.subr.mxu0 0.0
    %1465 = vmatpush2.msra.mxu0 0.0
    %1466 = vmatprep.subr.mxu0 0.0
    %1467 = vmatpush2.msra.mxu0 0.0
    %1468 = vmatprep.subr.mxu0 0.0
    %1469 = vmatpush2.msra.mxu0 0.0
    %1470 = vmatprep.mubr.f32.mxu0 0.0
    %1471 = vmatmul.mubr.f32.gmra.mxu0 %v1404
    %v1472 = vpop.f32.mrf.mxu0
    %v1473 = vadd.f32 0.0, %v1472
    %v1474 = vpop.f32.mrf.mxu0
    %1475 = vdwg.mxu0
    %v1476 = vadd.f32 %v187, %v1473
    %v1477 = vxor.u32 %v1476, 2147483648
    %v1478 = vmul.f32 %v1477, 1.442695
    %v1479 = vpow.pop %v1478
    %v1480 = vadd.f32 %v1479, 1.0
    %v1481 = vrcp.pop %v1480
    %v1482 = vmul.f32 1.0, %v1481
    %1483 = vmatprep.subr.mxu0 0.0
    %1484 = vmatpush1.msra.mxu0 0.0
    %1485 = vmatprep.subr.mxu0 0.0
    %1486 = vmatpush1.msra.mxu0 0.0
    %1487 = vmatprep.subr.mxu0 0.0
    %1488 = vmatpush1.msra.mxu0 0.0
    %1489 = vmatprep.subr.mxu0 0.0
    %1490 = vmatpush1.msra.mxu0 0.0
    %1491 = vmatprep.subr.mxu0 0.0
    %1492 = vmatpush1.msra.mxu0 0.0
    %1493 = vmatprep.subr.mxu0 0.0
    %1494 = vmatpush1.msra.mxu0 0.0
    %1495 = vmatprep.subr.mxu0 0.0
    %1496 = vmatpush1.msra.mxu0 0.0
    %1497 = vmatprep.subr.mxu0 0.0
    %1498 = vmatpush1.msra.mxu0 0.0
    %1499 = vmatprep.subr.mxu0 0.0
    %1500 = vmatpush1.msra.mxu0 0.0
    %1501 = vmatprep.subr.mxu0 0.0
    %1502 = vmatpush1.msra.mxu0 0.0
    %1503 = vmatprep.subr.mxu0 0.0
    %1504 = vmatpush1.msra.mxu0 0.0
    %1505 = vmatprep.subr.mxu0 0.0
    %1506 = vmatpush1.msra.mxu0 0.0
    %1507 = vmatprep.subr.mxu0 0.0
    %1508 = vmatpush1.msra.mxu0 %v452
    %1509 = vmatprep.subr.mxu0 0.0
    %1510 = vmatpush1.msra.mxu0 %v451
    %1511 = vmatprep.subr.mxu0 0.0
    %1512 = vmatpush1.msra.mxu0 %v450
    %1513 = vmatprep.subr.mxu0 0.0
    %1514 = vmatpush1.msra.mxu0 %v449
    %1515 = vmatprep.subr.mxu0 0.0
    %1516 = vmatpush2.msra.mxu0 0.0
    %1517 = vmatprep.subr.mxu0 0.0
    %1518 = vmatpush2.msra.mxu0 0.0
    %1519 = vmatprep.subr.mxu0 0.0
    %1520 = vmatpush2.msra.mxu0 0.0
    %1521 = vmatprep.subr.mxu0 0.0
    %1522 = vmatpush2.msra.mxu0 0.0
    %1523 = vmatprep.subr.mxu0 0.0
    %1524 = vmatpush2.msra.mxu0 0.0
    %1525 = vmatprep.subr.mxu0 0.0
    %1526 = vmatpush2.msra.mxu0 0.0
    %1527 = vmatprep.subr.mxu0 0.0
    %1528 = vmatpush2.msra.mxu0 0.0
    %1529 = vmatprep.subr.mxu0 0.0
    %1530 = vmatpush2.msra.mxu0 0.0
    %1531 = vmatprep.subr.mxu0 0.0
    %1532 = vmatpush2.msra.mxu0 0.0
    %1533 = vmatprep.subr.mxu0 0.0
    %1534 = vmatpush2.msra.mxu0 0.0
    %1535 = vmatprep.subr.mxu0 0.0
    %1536 = vmatpush2.msra.mxu0 0.0
    %1537 = vmatprep.subr.mxu0 0.0
    %1538 = vmatpush2.msra.mxu0 0.0
    %1539 = vmatprep.subr.mxu0 0.0
    %1540 = vmatpush2.msra.mxu0 0.0
    %1541 = vmatprep.subr.mxu0 0.0
    %1542 = vmatpush2.msra.mxu0 0.0
    %1543 = vmatprep.subr.mxu0 0.0
    %1544 = vmatpush2.msra.mxu0 0.0
    %1545 = vmatprep.subr.mxu0 0.0
    %1546 = vmatpush2.msra.mxu0 0.0
    %1547 = vmatprep.mubr.f32.mxu0 0.0
    %1548 = vmatmul.mubr.f32.gmra.mxu0 %v1404
    %v1549 = vpop.f32.mrf.mxu0
    %v1550 = vadd.f32 0.0, %v1549
    %v1551 = vpop.f32.mrf.mxu0
    %1552 = vdwg.mxu0
    %v1553 = vadd.f32 %v321, %v1550
    %v1554 = vxor.u32 %v1553, 2147483648
    %v1555 = vmul.f32 %v1554, 1.442695
    %v1556 = vpow.pop %v1555
    %v1557 = vadd.f32 %v1556, 1.0
    %v1558 = vrcp.pop %v1557
    %v1559 = vmul.f32 1.0, %v1558
    %1560 = vmatprep.subr.mxu0 0.0
    %1561 = vmatpush1.msra.mxu0 0.0
    %1562 = vmatprep.subr.mxu0 0.0
    %1563 = vmatpush1.msra.mxu0 0.0
    %1564 = vmatprep.subr.mxu0 0.0
    %1565 = vmatpush1.msra.mxu0 0.0
    %1566 = vmatprep.subr.mxu0 0.0
    %1567 = vmatpush1.msra.mxu0 0.0
    %1568 = vmatprep.subr.mxu0 0.0
    %1569 = vmatpush1.msra.mxu0 0.0
    %1570 = vmatprep.subr.mxu0 0.0
    %1571 = vmatpush1.msra.mxu0 0.0
    %1572 = vmatprep.subr.mxu0 0.0
    %1573 = vmatpush1.msra.mxu0 0.0
    %1574 = vmatprep.subr.mxu0 0.0
    %1575 = vmatpush1.msra.mxu0 0.0
    %1576 = vmatprep.subr.mxu0 0.0
    %1577 = vmatpush1.msra.mxu0 0.0
    %1578 = vmatprep.subr.mxu0 0.0
    %1579 = vmatpush1.msra.mxu0 0.0
    %1580 = vmatprep.subr.mxu0 0.0
    %1581 = vmatpush1.msra.mxu0 0.0
    %1582 = vmatprep.subr.mxu0 0.0
    %1583 = vmatpush1.msra.mxu0 0.0
    %1584 = vmatprep.subr.mxu0 0.0
    %1585 = vmatpush1.msra.mxu0 %v457
    %1586 = vmatprep.subr.mxu0 0.0
    %1587 = vmatpush1.msra.mxu0 %v456
    %1588 = vmatprep.subr.mxu0 0.0
    %1589 = vmatpush1.msra.mxu0 %v455
    %1590 = vmatprep.subr.mxu0 0.0
    %1591 = vmatpush1.msra.mxu0 %v454
    %1592 = vmatprep.subr.mxu0 0.0
    %1593 = vmatpush2.msra.mxu0 0.0
    %1594 = vmatprep.subr.mxu0 0.0
    %1595 = vmatpush2.msra.mxu0 0.0
    %1596 = vmatprep.subr.mxu0 0.0
    %1597 = vmatpush2.msra.mxu0 0.0
    %1598 = vmatprep.subr.mxu0 0.0
    %1599 = vmatpush2.msra.mxu0 0.0
    %1600 = vmatprep.subr.mxu0 0.0
    %1601 = vmatpush2.msra.mxu0 0.0
    %1602 = vmatprep.subr.mxu0 0.0
    %1603 = vmatpush2.msra.mxu0 0.0
    %1604 = vmatprep.subr.mxu0 0.0
    %1605 = vmatpush2.msra.mxu0 0.0
    %1606 = vmatprep.subr.mxu0 0.0
    %1607 = vmatpush2.msra.mxu0 0.0
    %1608 = vmatprep.subr.mxu0 0.0
    %1609 = vmatpush2.msra.mxu0 0.0
    %1610 = vmatprep.subr.mxu0 0.0
    %1611 = vmatpush2.msra.mxu0 0.0
    %1612 = vmatprep.subr.mxu0 0.0
    %1613 = vmatpush2.msra.mxu0 0.0
    %1614 = vmatprep.subr.mxu0 0.0
    %1615 = vmatpush2.msra.mxu0 0.0
    %1616 = vmatprep.subr.mxu0 0.0
    %1617 = vmatpush2.msra.mxu0 0.0
    %1618 = vmatprep.subr.mxu0 0.0
    %1619 = vmatpush2.msra.mxu0 0.0
    %1620 = vmatprep.subr.mxu0 0.0
    %1621 = vmatpush2.msra.mxu0 0.0
    %1622 = vmatprep.subr.mxu0 0.0
    %1623 = vmatpush2.msra.mxu0 0.0
    %1624 = vmatprep.mubr.f32.mxu0 0.0
    %1625 = vmatmul.mubr.f32.gmra.mxu0 %v1404
    %v1626 = vpop.f32.mrf.mxu0
    %v1627 = vadd.f32 %v622, %v1626
    %v1628 = vpop.f32.mrf.mxu0
    %1629 = vdwg.mxu0
    %v1630 = vmul.f32 %v1482, %v1627
    %v1631 = vadd.f32 %v421, %v1630
    %v1632 = vtanh.pop %v1631
    %v1633 = vsub.f32 1.0, %v1559
    %v1634 = vmul.f32 %v1633, %v1632
    %v1635 = vmul.f32 %v1559, %v1402
    %v1636 = vadd.f32 %v1634, %v1635
    %v1638 = vsel %vm460, %v1636, 0
    %1640 = vmatprep.subr.mxu0 0.0
    %1641 = vmatpush1.msra.mxu0 0.0
    %1642 = vmatprep.subr.mxu0 0.0
    %1643 = vmatpush1.msra.mxu0 0.0
    %1644 = vmatprep.subr.mxu0 0.0
    %1645 = vmatpush1.msra.mxu0 0.0
    %1646 = vmatprep.subr.mxu0 0.0
    %1647 = vmatpush1.msra.mxu0 0.0
    %1648 = vmatprep.subr.mxu0 0.0
    %1649 = vmatpush1.msra.mxu0 0.0
    %1650 = vmatprep.subr.mxu0 0.0
    %1651 = vmatpush1.msra.mxu0 0.0
    %1652 = vmatprep.subr.mxu0 0.0
    %1653 = vmatpush1.msra.mxu0 0.0
    %1654 = vmatprep.subr.mxu0 0.0
    %1655 = vmatpush1.msra.mxu0 0.0
    %1656 = vmatprep.subr.mxu0 0.0
    %1657 = vmatpush1.msra.mxu0 0.0
    %1658 = vmatprep.subr.mxu0 0.0
    %1659 = vmatpush1.msra.mxu0 0.0
    %1660 = vmatprep.subr.mxu0 0.0
    %1661 = vmatpush1.msra.mxu0 0.0
    %1662 = vmatprep.subr.mxu0 0.0
    %1663 = vmatpush1.msra.mxu0 0.0
    %1664 = vmatprep.subr.mxu0 0.0
    %1665 = vmatpush1.msra.mxu0 %v447
    %1666 = vmatprep.subr.mxu0 0.0
    %1667 = vmatpush1.msra.mxu0 %v446
    %1668 = vmatprep.subr.mxu0 0.0
    %1669 = vmatpush1.msra.mxu0 %v445
    %1670 = vmatprep.subr.mxu0 0.0
    %1671 = vmatpush1.msra.mxu0 %v444
    %1672 = vmatprep.subr.mxu0 0.0
    %1673 = vmatpush2.msra.mxu0 0.0
    %1674 = vmatprep.subr.mxu0 0.0
    %1675 = vmatpush2.msra.mxu0 0.0
    %1676 = vmatprep.subr.mxu0 0.0
    %1677 = vmatpush2.msra.mxu0 0.0
    %1678 = vmatprep.subr.mxu0 0.0
    %1679 = vmatpush2.msra.mxu0 0.0
    %1680 = vmatprep.subr.mxu0 0.0
    %1681 = vmatpush2.msra.mxu0 0.0
    %1682 = vmatprep.subr.mxu0 0.0
    %1683 = vmatpush2.msra.mxu0 0.0
    %1684 = vmatprep.subr.mxu0 0.0
    %1685 = vmatpush2.msra.mxu0 0.0
    %1686 = vmatprep.subr.mxu0 0.0
    %1687 = vmatpush2.msra.mxu0 0.0
    %1688 = vmatprep.subr.mxu0 0.0
    %1689 = vmatpush2.msra.mxu0 0.0
    %1690 = vmatprep.subr.mxu0 0.0
    %1691 = vmatpush2.msra.mxu0 0.0
    %1692 = vmatprep.subr.mxu0 0.0
    %1693 = vmatpush2.msra.mxu0 0.0
    %1694 = vmatprep.subr.mxu0 0.0
    %1695 = vmatpush2.msra.mxu0 0.0
    %1696 = vmatprep.subr.mxu0 0.0
    %1697 = vmatpush2.msra.mxu0 0.0
    %1698 = vmatprep.subr.mxu0 0.0
    %1699 = vmatpush2.msra.mxu0 0.0
    %1700 = vmatprep.subr.mxu0 0.0
    %1701 = vmatpush2.msra.mxu0 0.0
    %1702 = vmatprep.subr.mxu0 0.0
    %1703 = vmatpush2.msra.mxu0 0.0
    %1704 = vmatprep.mubr.f32.mxu0 0.0
    %1705 = vmatmul.mubr.f32.gmra.mxu0 %v1638
    %v1706 = vpop.f32.mrf.mxu0
    %v1707 = vadd.f32 0.0, %v1706
    %v1708 = vpop.f32.mrf.mxu0
    %1709 = vdwg.mxu0
    %v1710 = vadd.f32 %v186, %v1707
    %v1711 = vxor.u32 %v1710, 2147483648
    %v1712 = vmul.f32 %v1711, 1.442695
    %v1713 = vpow.pop %v1712
    %v1714 = vadd.f32 %v1713, 1.0
    %v1715 = vrcp.pop %v1714
    %v1716 = vmul.f32 1.0, %v1715
    %1717 = vmatprep.subr.mxu0 0.0
    %1718 = vmatpush1.msra.mxu0 0.0
    %1719 = vmatprep.subr.mxu0 0.0
    %1720 = vmatpush1.msra.mxu0 0.0
    %1721 = vmatprep.subr.mxu0 0.0
    %1722 = vmatpush1.msra.mxu0 0.0
    %1723 = vmatprep.subr.mxu0 0.0
    %1724 = vmatpush1.msra.mxu0 0.0
    %1725 = vmatprep.subr.mxu0 0.0
    %1726 = vmatpush1.msra.mxu0 0.0
    %1727 = vmatprep.subr.mxu0 0.0
    %1728 = vmatpush1.msra.mxu0 0.0
    %1729 = vmatprep.subr.mxu0 0.0
    %1730 = vmatpush1.msra.mxu0 0.0
    %1731 = vmatprep.subr.mxu0 0.0
    %1732 = vmatpush1.msra.mxu0 0.0
    %1733 = vmatprep.subr.mxu0 0.0
    %1734 = vmatpush1.msra.mxu0 0.0
    %1735 = vmatprep.subr.mxu0 0.0
    %1736 = vmatpush1.msra.mxu0 0.0
    %1737 = vmatprep.subr.mxu0 0.0
    %1738 = vmatpush1.msra.mxu0 0.0
    %1739 = vmatprep.subr.mxu0 0.0
    %1740 = vmatpush1.msra.mxu0 0.0
    %1741 = vmatprep.subr.mxu0 0.0
    %1742 = vmatpush1.msra.mxu0 %v452
    %1743 = vmatprep.subr.mxu0 0.0
    %1744 = vmatpush1.msra.mxu0 %v451
    %1745 = vmatprep.subr.mxu0 0.0
    %1746 = vmatpush1.msra.mxu0 %v450
    %1747 = vmatprep.subr.mxu0 0.0
    %1748 = vmatpush1.msra.mxu0 %v449
    %1749 = vmatprep.subr.mxu0 0.0
    %1750 = vmatpush2.msra.mxu0 0.0
    %1751 = vmatprep.subr.mxu0 0.0
    %1752 = vmatpush2.msra.mxu0 0.0
    %1753 = vmatprep.subr.mxu0 0.0
    %1754 = vmatpush2.msra.mxu0 0.0
    %1755 = vmatprep.subr.mxu0 0.0
    %1756 = vmatpush2.msra.mxu0 0.0
    %1757 = vmatprep.subr.mxu0 0.0
    %1758 = vmatpush2.msra.mxu0 0.0
    %1759 = vmatprep.subr.mxu0 0.0
    %1760 = vmatpush2.msra.mxu0 0.0
    %1761 = vmatprep.subr.mxu0 0.0
    %1762 = vmatpush2.msra.mxu0 0.0
    %1763 = vmatprep.subr.mxu0 0.0
    %1764 = vmatpush2.msra.mxu0 0.0
    %1765 = vmatprep.subr.mxu0 0.0
    %1766 = vmatpush2.msra.mxu0 0.0
    %1767 = vmatprep.subr.mxu0 0.0
    %1768 = vmatpush2.msra.mxu0 0.0
    %1769 = vmatprep.subr.mxu0 0.0
    %1770 = vmatpush2.msra.mxu0 0.0
    %1771 = vmatprep.subr.mxu0 0.0
    %1772 = vmatpush2.msra.mxu0 0.0
    %1773 = vmatprep.subr.mxu0 0.0
    %1774 = vmatpush2.msra.mxu0 0.0
    %1775 = vmatprep.subr.mxu0 0.0
    %1776 = vmatpush2.msra.mxu0 0.0
    %1777 = vmatprep.subr.mxu0 0.0
    %1778 = vmatpush2.msra.mxu0 0.0
    %1779 = vmatprep.subr.mxu0 0.0
    %1780 = vmatpush2.msra.mxu0 0.0
    %1781 = vmatprep.mubr.f32.mxu0 0.0
    %1782 = vmatmul.mubr.f32.gmra.mxu0 %v1638
    %v1783 = vpop.f32.mrf.mxu0
    %v1784 = vadd.f32 0.0, %v1783
    %v1785 = vpop.f32.mrf.mxu0
    %1786 = vdwg.mxu0
    %v1787 = vadd.f32 %v320, %v1784
    %v1788 = vxor.u32 %v1787, 2147483648
    %v1789 = vmul.f32 %v1788, 1.442695
    %v1790 = vpow.pop %v1789
    %v1791 = vadd.f32 %v1790, 1.0
    %v1792 = vrcp.pop %v1791
    %v1793 = vmul.f32 1.0, %v1792
    %1794 = vmatprep.subr.mxu0 0.0
    %1795 = vmatpush1.msra.mxu0 0.0
    %1796 = vmatprep.subr.mxu0 0.0
    %1797 = vmatpush1.msra.mxu0 0.0
    %1798 = vmatprep.subr.mxu0 0.0
    %1799 = vmatpush1.msra.mxu0 0.0
    %1800 = vmatprep.subr.mxu0 0.0
    %1801 = vmatpush1.msra.mxu0 0.0
    %1802 = vmatprep.subr.mxu0 0.0
    %1803 = vmatpush1.msra.mxu0 0.0
    %1804 = vmatprep.subr.mxu0 0.0
    %1805 = vmatpush1.msra.mxu0 0.0
    %1806 = vmatprep.subr.mxu0 0.0
    %1807 = vmatpush1.msra.mxu0 0.0
    %1808 = vmatprep.subr.mxu0 0.0
    %1809 = vmatpush1.msra.mxu0 0.0
    %1810 = vmatprep.subr.mxu0 0.0
    %1811 = vmatpush1.msra.mxu0 0.0
    %1812 = vmatprep.subr.mxu0 0.0
    %1813 = vmatpush1.msra.mxu0 0.0
    %1814 = vmatprep.subr.mxu0 0.0
    %1815 = vmatpush1.msra.mxu0 0.0
    %1816 = vmatprep.subr.mxu0 0.0
    %1817 = vmatpush1.msra.mxu0 0.0
    %1818 = vmatprep.subr.mxu0 0.0
    %1819 = vmatpush1.msra.mxu0 %v457
    %1820 = vmatprep.subr.mxu0 0.0
    %1821 = vmatpush1.msra.mxu0 %v456
    %1822 = vmatprep.subr.mxu0 0.0
    %1823 = vmatpush1.msra.mxu0 %v455
    %1824 = vmatprep.subr.mxu0 0.0
    %1825 = vmatpush1.msra.mxu0 %v454
    %1826 = vmatprep.subr.mxu0 0.0
    %1827 = vmatpush2.msra.mxu0 0.0
    %1828 = vmatprep.subr.mxu0 0.0
    %1829 = vmatpush2.msra.mxu0 0.0
    %1830 = vmatprep.subr.mxu0 0.0
    %1831 = vmatpush2.msra.mxu0 0.0
    %1832 = vmatprep.subr.mxu0 0.0
    %1833 = vmatpush2.msra.mxu0 0.0
    %1834 = vmatprep.subr.mxu0 0.0
    %1835 = vmatpush2.msra.mxu0 0.0
    %1836 = vmatprep.subr.mxu0 0.0
    %1837 = vmatpush2.msra.mxu0 0.0
    %1838 = vmatprep.subr.mxu0 0.0
    %1839 = vmatpush2.msra.mxu0 0.0
    %1840 = vmatprep.subr.mxu0 0.0
    %1841 = vmatpush2.msra.mxu0 0.0
    %1842 = vmatprep.subr.mxu0 0.0
    %1843 = vmatpush2.msra.mxu0 0.0
    %1844 = vmatprep.subr.mxu0 0.0
    %1845 = vmatpush2.msra.mxu0 0.0
    %1846 = vmatprep.subr.mxu0 0.0
    %1847 = vmatpush2.msra.mxu0 0.0
    %1848 = vmatprep.subr.mxu0 0.0
    %1849 = vmatpush2.msra.mxu0 0.0
    %1850 = vmatprep.subr.mxu0 0.0
    %1851 = vmatpush2.msra.mxu0 0.0
    %1852 = vmatprep.subr.mxu0 0.0
    %1853 = vmatpush2.msra.mxu0 0.0
    %1854 = vmatprep.subr.mxu0 0.0
    %1855 = vmatpush2.msra.mxu0 0.0
    %1856 = vmatprep.subr.mxu0 0.0
    %1857 = vmatpush2.msra.mxu0 0.0
    %1858 = vmatprep.mubr.f32.mxu0 0.0
    %1859 = vmatmul.mubr.f32.gmra.mxu0 %v1638
    %v1860 = vpop.f32.mrf.mxu0
    %v1861 = vadd.f32 %v622, %v1860
    %v1862 = vpop.f32.mrf.mxu0
    %1863 = vdwg.mxu0
    %v1864 = vmul.f32 %v1716, %v1861
    %v1865 = vadd.f32 %v416, %v1864
    %v1866 = vtanh.pop %v1865
    %v1867 = vsub.f32 1.0, %v1793
    %v1868 = vmul.f32 %v1867, %v1866
    %v1869 = vmul.f32 %v1793, %v1636
    %v1870 = vadd.f32 %v1868, %v1869
    %v1872 = vsel %vm460, %v1870, 0
    %1874 = vmatprep.subr.mxu0 0.0
    %1875 = vmatpush1.msra.mxu0 0.0
    %1876 = vmatprep.subr.mxu0 0.0
    %1877 = vmatpush1.msra.mxu0 0.0
    %1878 = vmatprep.subr.mxu0 0.0
    %1879 = vmatpush1.msra.mxu0 0.0
    %1880 = vmatprep.subr.mxu0 0.0
    %1881 = vmatpush1.msra.mxu0 0.0
    %1882 = vmatprep.subr.mxu0 0.0
    %1883 = vmatpush1.msra.mxu0 0.0
    %1884 = vmatprep.subr.mxu0 0.0
    %1885 = vmatpush1.msra.mxu0 0.0
    %1886 = vmatprep.subr.mxu0 0.0
    %1887 = vmatpush1.msra.mxu0 0.0
    %1888 = vmatprep.subr.mxu0 0.0
    %1889 = vmatpush1.msra.mxu0 0.0
    %1890 = vmatprep.subr.mxu0 0.0
    %1891 = vmatpush1.msra.mxu0 0.0
    %1892 = vmatprep.subr.mxu0 0.0
    %1893 = vmatpush1.msra.mxu0 0.0
    %1894 = vmatprep.subr.mxu0 0.0
    %1895 = vmatpush1.msra.mxu0 0.0
    %1896 = vmatprep.subr.mxu0 0.0
    %1897 = vmatpush1.msra.mxu0 0.0
    %1898 = vmatprep.subr.mxu0 0.0
    %1899 = vmatpush1.msra.mxu0 %v447
    %1900 = vmatprep.subr.mxu0 0.0
    %1901 = vmatpush1.msra.mxu0 %v446
    %1902 = vmatprep.subr.mxu0 0.0
    %1903 = vmatpush1.msra.mxu0 %v445
    %1904 = vmatprep.subr.mxu0 0.0
    %1905 = vmatpush1.msra.mxu0 %v444
    %1906 = vmatprep.subr.mxu0 0.0
    %1907 = vmatpush2.msra.mxu0 0.0
    %1908 = vmatprep.subr.mxu0 0.0
    %1909 = vmatpush2.msra.mxu0 0.0
    %1910 = vmatprep.subr.mxu0 0.0
    %1911 = vmatpush2.msra.mxu0 0.0
    %1912 = vmatprep.subr.mxu0 0.0
    %1913 = vmatpush2.msra.mxu0 0.0
    %1914 = vmatprep.subr.mxu0 0.0
    %1915 = vmatpush2.msra.mxu0 0.0
    %1916 = vmatprep.subr.mxu0 0.0
    %1917 = vmatpush2.msra.mxu0 0.0
    %1918 = vmatprep.subr.mxu0 0.0
    %1919 = vmatpush2.msra.mxu0 0.0
    %1920 = vmatprep.subr.mxu0 0.0
    %1921 = vmatpush2.msra.mxu0 0.0
    %1922 = vmatprep.subr.mxu0 0.0
    %1923 = vmatpush2.msra.mxu0 0.0
    %1924 = vmatprep.subr.mxu0 0.0
    %1925 = vmatpush2.msra.mxu0 0.0
    %1926 = vmatprep.subr.mxu0 0.0
    %1927 = vmatpush2.msra.mxu0 0.0
    %1928 = vmatprep.subr.mxu0 0.0
    %1929 = vmatpush2.msra.mxu0 0.0
    %1930 = vmatprep.subr.mxu0 0.0
    %1931 = vmatpush2.msra.mxu0 0.0
    %1932 = vmatprep.subr.mxu0 0.0
    %1933 = vmatpush2.msra.mxu0 0.0
    %1934 = vmatprep.subr.mxu0 0.0
    %1935 = vmatpush2.msra.mxu0 0.0
    %1936 = vmatprep.subr.mxu0 0.0
    %1937 = vmatpush2.msra.mxu0 0.0
    %1938 = vmatprep.mubr.f32.mxu0 0.0
    %1939 = vmatmul.mubr.f32.gmra.mxu0 %v1872
    %v1940 = vpop.f32.mrf.mxu0
    %v1941 = vadd.f32 0.0, %v1940
    %v1942 = vpop.f32.mrf.mxu0
    %1943 = vdwg.mxu0
    %v1944 = vadd.f32 %v185, %v1941
    %v1945 = vxor.u32 %v1944, 2147483648
    %v1946 = vmul.f32 %v1945, 1.442695
    %v1947 = vpow.pop %v1946
    %v1948 = vadd.f32 %v1947, 1.0
    %v1949 = vrcp.pop %v1948
    %v1950 = vmul.f32 1.0, %v1949
    %1951 = vmatprep.subr.mxu0 0.0
    %1952 = vmatpush1.msra.mxu0 0.0
    %1953 = vmatprep.subr.mxu0 0.0
    %1954 = vmatpush1.msra.mxu0 0.0
    %1955 = vmatprep.subr.mxu0 0.0
    %1956 = vmatpush1.msra.mxu0 0.0
    %1957 = vmatprep.subr.mxu0 0.0
    %1958 = vmatpush1.msra.mxu0 0.0
    %1959 = vmatprep.subr.mxu0 0.0
    %1960 = vmatpush1.msra.mxu0 0.0
    %1961 = vmatprep.subr.mxu0 0.0
    %1962 = vmatpush1.msra.mxu0 0.0
    %1963 = vmatprep.subr.mxu0 0.0
    %1964 = vmatpush1.msra.mxu0 0.0
    %1965 = vmatprep.subr.mxu0 0.0
    %1966 = vmatpush1.msra.mxu0 0.0
    %1967 = vmatprep.subr.mxu0 0.0
    %1968 = vmatpush1.msra.mxu0 0.0
    %1969 = vmatprep.subr.mxu0 0.0
    %1970 = vmatpush1.msra.mxu0 0.0
    %1971 = vmatprep.subr.mxu0 0.0
    %1972 = vmatpush1.msra.mxu0 0.0
    %1973 = vmatprep.subr.mxu0 0.0
    %1974 = vmatpush1.msra.mxu0 0.0
    %1975 = vmatprep.subr.mxu0 0.0
    %1976 = vmatpush1.msra.mxu0 %v452
    %1977 = vmatprep.subr.mxu0 0.0
    %1978 = vmatpush1.msra.mxu0 %v451
    %1979 = vmatprep.subr.mxu0 0.0
    %1980 = vmatpush1.msra.mxu0 %v450
    %1981 = vmatprep.subr.mxu0 0.0
    %1982 = vmatpush1.msra.mxu0 %v449
    %1983 = vmatprep.subr.mxu0 0.0
    %1984 = vmatpush2.msra.mxu0 0.0
    %1985 = vmatprep.subr.mxu0 0.0
    %1986 = vmatpush2.msra.mxu0 0.0
    %1987 = vmatprep.subr.mxu0 0.0
    %1988 = vmatpush2.msra.mxu0 0.0
    %1989 = vmatprep.subr.mxu0 0.0
    %1990 = vmatpush2.msra.mxu0 0.0
    %1991 = vmatprep.subr.mxu0 0.0
    %1992 = vmatpush2.msra.mxu0 0.0
    %1993 = vmatprep.subr.mxu0 0.0
    %1994 = vmatpush2.msra.mxu0 0.0
    %1995 = vmatprep.subr.mxu0 0.0
    %1996 = vmatpush2.msra.mxu0 0.0
    %1997 = vmatprep.subr.mxu0 0.0
    %1998 = vmatpush2.msra.mxu0 0.0
    %1999 = vmatprep.subr.mxu0 0.0
    %2000 = vmatpush2.msra.mxu0 0.0
    %2001 = vmatprep.subr.mxu0 0.0
    %2002 = vmatpush2.msra.mxu0 0.0
    %2003 = vmatprep.subr.mxu0 0.0
    %2004 = vmatpush2.msra.mxu0 0.0
    %2005 = vmatprep.subr.mxu0 0.0
    %2006 = vmatpush2.msra.mxu0 0.0
    %2007 = vmatprep.subr.mxu0 0.0
    %2008 = vmatpush2.msra.mxu0 0.0
    %2009 = vmatprep.subr.mxu0 0.0
    %2010 = vmatpush2.msra.mxu0 0.0
    %2011 = vmatprep.subr.mxu0 0.0
    %2012 = vmatpush2.msra.mxu0 0.0
    %2013 = vmatprep.subr.mxu0 0.0
    %2014 = vmatpush2.msra.mxu0 0.0
    %2015 = vmatprep.mubr.f32.mxu0 0.0
    %2016 = vmatmul.mubr.f32.gmra.mxu0 %v1872
    %v2017 = vpop.f32.mrf.mxu0
    %v2018 = vadd.f32 0.0, %v2017
    %v2019 = vpop.f32.mrf.mxu0
    %2020 = vdwg.mxu0
    %v2021 = vadd.f32 %v319, %v2018
    %v2022 = vxor.u32 %v2021, 2147483648
    %v2023 = vmul.f32 %v2022, 1.442695
    %v2024 = vpow.pop %v2023
    %v2025 = vadd.f32 %v2024, 1.0
    %v2026 = vrcp.pop %v2025
    %v2027 = vmul.f32 1.0, %v2026
    %2028 = vmatprep.subr.mxu0 0.0
    %2029 = vmatpush1.msra.mxu0 0.0
    %2030 = vmatprep.subr.mxu0 0.0
    %2031 = vmatpush1.msra.mxu0 0.0
    %2032 = vmatprep.subr.mxu0 0.0
    %2033 = vmatpush1.msra.mxu0 0.0
    %2034 = vmatprep.subr.mxu0 0.0
    %2035 = vmatpush1.msra.mxu0 0.0
    %2036 = vmatprep.subr.mxu0 0.0
    %2037 = vmatpush1.msra.mxu0 0.0
    %2038 = vmatprep.subr.mxu0 0.0
    %2039 = vmatpush1.msra.mxu0 0.0
    %2040 = vmatprep.subr.mxu0 0.0
    %2041 = vmatpush1.msra.mxu0 0.0
    %2042 = vmatprep.subr.mxu0 0.0
    %2043 = vmatpush1.msra.mxu0 0.0
    %2044 = vmatprep.subr.mxu0 0.0
    %2045 = vmatpush1.msra.mxu0 0.0
    %2046 = vmatprep.subr.mxu0 0.0
    %2047 = vmatpush1.msra.mxu0 0.0
    %2048 = vmatprep.subr.mxu0 0.0
    %2049 = vmatpush1.msra.mxu0 0.0
    %2050 = vmatprep.subr.mxu0 0.0
    %2051 = vmatpush1.msra.mxu0 0.0
    %2052 = vmatprep.subr.mxu0 0.0
    %2053 = vmatpush1.msra.mxu0 %v457
    %2054 = vmatprep.subr.mxu0 0.0
    %2055 = vmatpush1.msra.mxu0 %v456
    %2056 = vmatprep.subr.mxu0 0.0
    %2057 = vmatpush1.msra.mxu0 %v455
    %2058 = vmatprep.subr.mxu0 0.0
    %2059 = vmatpush1.msra.mxu0 %v454
    %2060 = vmatprep.subr.mxu0 0.0
    %2061 = vmatpush2.msra.mxu0 0.0
    %2062 = vmatprep.subr.mxu0 0.0
    %2063 = vmatpush2.msra.mxu0 0.0
    %2064 = vmatprep.subr.mxu0 0.0
    %2065 = vmatpush2.msra.mxu0 0.0
    %2066 = vmatprep.subr.mxu0 0.0
    %2067 = vmatpush2.msra.mxu0 0.0
    %2068 = vmatprep.subr.mxu0 0.0
    %2069 = vmatpush2.msra.mxu0 0.0
    %2070 = vmatprep.subr.mxu0 0.0
    %2071 = vmatpush2.msra.mxu0 0.0
    %2072 = vmatprep.subr.mxu0 0.0
    %2073 = vmatpush2.msra.mxu0 0.0
    %2074 = vmatprep.subr.mxu0 0.0
    %2075 = vmatpush2.msra.mxu0 0.0
    %2076 = vmatprep.subr.mxu0 0.0
    %2077 = vmatpush2.msra.mxu0 0.0
    %2078 = vmatprep.subr.mxu0 0.0
    %2079 = vmatpush2.msra.mxu0 0.0
    %2080 = vmatprep.subr.mxu0 0.0
    %2081 = vmatpush2.msra.mxu0 0.0
    %2082 = vmatprep.subr.mxu0 0.0
    %2083 = vmatpush2.msra.mxu0 0.0
    %2084 = vmatprep.subr.mxu0 0.0
    %2085 = vmatpush2.msra.mxu0 0.0
    %2086 = vmatprep.subr.mxu0 0.0
    %2087 = vmatpush2.msra.mxu0 0.0
    %2088 = vmatprep.subr.mxu0 0.0
    %2089 = vmatpush2.msra.mxu0 0.0
    %2090 = vmatprep.subr.mxu0 0.0
    %2091 = vmatpush2.msra.mxu0 0.0
    %2092 = vmatprep.mubr.f32.mxu0 0.0
    %2093 = vmatmul.mubr.f32.gmra.mxu0 %v1872
    %v2094 = vpop.f32.mrf.mxu0
    %v2095 = vadd.f32 %v622, %v2094
    %v2096 = vpop.f32.mrf.mxu0
    %2097 = vdwg.mxu0
    %v2098 = vmul.f32 %v1950, %v2095
    %v2099 = vadd.f32 %v411, %v2098
    %v2100 = vtanh.pop %v2099
    %v2101 = vsub.f32 1.0, %v2027
    %v2102 = vmul.f32 %v2101, %v2100
    %v2103 = vmul.f32 %v2027, %v1870
    %v2104 = vadd.f32 %v2102, %v2103
    %v2106 = vsel %vm460, %v2104, 0
    %2108 = vmatprep.subr.mxu0 0.0
    %2109 = vmatpush1.msra.mxu0 0.0
    %2110 = vmatprep.subr.mxu0 0.0
    %2111 = vmatpush1.msra.mxu0 0.0
    %2112 = vmatprep.subr.mxu0 0.0
    %2113 = vmatpush1.msra.mxu0 0.0
    %2114 = vmatprep.subr.mxu0 0.0
    %2115 = vmatpush1.msra.mxu0 0.0
    %2116 = vmatprep.subr.mxu0 0.0
    %2117 = vmatpush1.msra.mxu0 0.0
    %2118 = vmatprep.subr.mxu0 0.0
    %2119 = vmatpush1.msra.mxu0 0.0
    %2120 = vmatprep.subr.mxu0 0.0
    %2121 = vmatpush1.msra.mxu0 0.0
    %2122 = vmatprep.subr.mxu0 0.0
    %2123 = vmatpush1.msra.mxu0 0.0
    %2124 = vmatprep.subr.mxu0 0.0
    %2125 = vmatpush1.msra.mxu0 0.0
    %2126 = vmatprep.subr.mxu0 0.0
    %2127 = vmatpush1.msra.mxu0 0.0
    %2128 = vmatprep.subr.mxu0 0.0
    %2129 = vmatpush1.msra.mxu0 0.0
    %2130 = vmatprep.subr.mxu0 0.0
    %2131 = vmatpush1.msra.mxu0 0.0
    %2132 = vmatprep.subr.mxu0 0.0
    %2133 = vmatpush1.msra.mxu0 %v447
    %2134 = vmatprep.subr.mxu0 0.0
    %2135 = vmatpush1.msra.mxu0 %v446
    %2136 = vmatprep.subr.mxu0 0.0
    %2137 = vmatpush1.msra.mxu0 %v445
    %2138 = vmatprep.subr.mxu0 0.0
    %2139 = vmatpush1.msra.mxu0 %v444
    %2140 = vmatprep.subr.mxu0 0.0
    %2141 = vmatpush2.msra.mxu0 0.0
    %2142 = vmatprep.subr.mxu0 0.0
    %2143 = vmatpush2.msra.mxu0 0.0
    %2144 = vmatprep.subr.mxu0 0.0
    %2145 = vmatpush2.msra.mxu0 0.0
    %2146 = vmatprep.subr.mxu0 0.0
    %2147 = vmatpush2.msra.mxu0 0.0
    %2148 = vmatprep.subr.mxu0 0.0
    %2149 = vmatpush2.msra.mxu0 0.0
    %2150 = vmatprep.subr.mxu0 0.0
    %2151 = vmatpush2.msra.mxu0 0.0
    %2152 = vmatprep.subr.mxu0 0.0
    %2153 = vmatpush2.msra.mxu0 0.0
    %2154 = vmatprep.subr.mxu0 0.0
    %2155 = vmatpush2.msra.mxu0 0.0
    %2156 = vmatprep.subr.mxu0 0.0
    %2157 = vmatpush2.msra.mxu0 0.0
    %2158 = vmatprep.subr.mxu0 0.0
    %2159 = vmatpush2.msra.mxu0 0.0
    %2160 = vmatprep.subr.mxu0 0.0
    %2161 = vmatpush2.msra.mxu0 0.0
    %2162 = vmatprep.subr.mxu0 0.0
    %2163 = vmatpush2.msra.mxu0 0.0
    %2164 = vmatprep.subr.mxu0 0.0
    %2165 = vmatpush2.msra.mxu0 0.0
    %2166 = vmatprep.subr.mxu0 0.0
    %2167 = vmatpush2.msra.mxu0 0.0
    %2168 = vmatprep.subr.mxu0 0.0
    %2169 = vmatpush2.msra.mxu0 0.0
    %2170 = vmatprep.subr.mxu0 0.0
    %2171 = vmatpush2.msra.mxu0 0.0
    %2172 = vmatprep.mubr.f32.mxu0 0.0
    %2173 = vmatmul.mubr.f32.gmra.mxu0 %v2106
    %v2174 = vpop.f32.mrf.mxu0
    %v2175 = vadd.f32 0.0, %v2174
    %v2176 = vpop.f32.mrf.mxu0
    %2177 = vdwg.mxu0
    %v2178 = vadd.f32 %v184, %v2175
    %v2179 = vxor.u32 %v2178, 2147483648
    %v2180 = vmul.f32 %v2179, 1.442695
    %v2181 = vpow.pop %v2180
    %v2182 = vadd.f32 %v2181, 1.0
    %v2183 = vrcp.pop %v2182
    %v2184 = vmul.f32 1.0, %v2183
    %2185 = vmatprep.subr.mxu0 0.0
    %2186 = vmatpush1.msra.mxu0 0.0
    %2187 = vmatprep.subr.mxu0 0.0
    %2188 = vmatpush1.msra.mxu0 0.0
    %2189 = vmatprep.subr.mxu0 0.0
    %2190 = vmatpush1.msra.mxu0 0.0
    %2191 = vmatprep.subr.mxu0 0.0
    %2192 = vmatpush1.msra.mxu0 0.0
    %2193 = vmatprep.subr.mxu0 0.0
    %2194 = vmatpush1.msra.mxu0 0.0
    %2195 = vmatprep.subr.mxu0 0.0
    %2196 = vmatpush1.msra.mxu0 0.0
    %2197 = vmatprep.subr.mxu0 0.0
    %2198 = vmatpush1.msra.mxu0 0.0
    %2199 = vmatprep.subr.mxu0 0.0
    %2200 = vmatpush1.msra.mxu0 0.0
    %2201 = vmatprep.subr.mxu0 0.0
    %2202 = vmatpush1.msra.mxu0 0.0
    %2203 = vmatprep.subr.mxu0 0.0
    %2204 = vmatpush1.msra.mxu0 0.0
    %2205 = vmatprep.subr.mxu0 0.0
    %2206 = vmatpush1.msra.mxu0 0.0
    %2207 = vmatprep.subr.mxu0 0.0
    %2208 = vmatpush1.msra.mxu0 0.0
    %2209 = vmatprep.subr.mxu0 0.0
    %2210 = vmatpush1.msra.mxu0 %v452
    %2211 = vmatprep.subr.mxu0 0.0
    %2212 = vmatpush1.msra.mxu0 %v451
    %2213 = vmatprep.subr.mxu0 0.0
    %2214 = vmatpush1.msra.mxu0 %v450
    %2215 = vmatprep.subr.mxu0 0.0
    %2216 = vmatpush1.msra.mxu0 %v449
    %2217 = vmatprep.subr.mxu0 0.0
    %2218 = vmatpush2.msra.mxu0 0.0
    %2219 = vmatprep.subr.mxu0 0.0
    %2220 = vmatpush2.msra.mxu0 0.0
    %2221 = vmatprep.subr.mxu0 0.0
    %2222 = vmatpush2.msra.mxu0 0.0
    %2223 = vmatprep.subr.mxu0 0.0
    %2224 = vmatpush2.msra.mxu0 0.0
    %2225 = vmatprep.subr.mxu0 0.0
    %2226 = vmatpush2.msra.mxu0 0.0
    %2227 = vmatprep.subr.mxu0 0.0
    %2228 = vmatpush2.msra.mxu0 0.0
    %2229 = vmatprep.subr.mxu0 0.0
    %2230 = vmatpush2.msra.mxu0 0.0
    %2231 = vmatprep.subr.mxu0 0.0
    %2232 = vmatpush2.msra.mxu0 0.0
    %2233 = vmatprep.subr.mxu0 0.0
    %2234 = vmatpush2.msra.mxu0 0.0
    %2235 = vmatprep.subr.mxu0 0.0
    %2236 = vmatpush2.msra.mxu0 0.0
    %2237 = vmatprep.subr.mxu0 0.0
    %2238 = vmatpush2.msra.mxu0 0.0
    %2239 = vmatprep.subr.mxu0 0.0
    %2240 = vmatpush2.msra.mxu0 0.0
    %2241 = vmatprep.subr.mxu0 0.0
    %2242 = vmatpush2.msra.mxu0 0.0
    %2243 = vmatprep.subr.mxu0 0.0
    %2244 = vmatpush2.msra.mxu0 0.0
    %2245 = vmatprep.subr.mxu0 0.0
    %2246 = vmatpush2.msra.mxu0 0.0
    %2247 = vmatprep.subr.mxu0 0.0
    %2248 = vmatpush2.msra.mxu0 0.0
    %2249 = vmatprep.mubr.f32.mxu0 0.0
    %2250 = vmatmul.mubr.f32.gmra.mxu0 %v2106
    %v2251 = vpop.f32.mrf.mxu0
    %v2252 = vadd.f32 0.0, %v2251
    %v2253 = vpop.f32.mrf.mxu0
    %2254 = vdwg.mxu0
    %v2255 = vadd.f32 %v318, %v2252
    %v2256 = vxor.u32 %v2255, 2147483648
    %v2257 = vmul.f32 %v2256, 1.442695
    %v2258 = vpow.pop %v2257
    %v2259 = vadd.f32 %v2258, 1.0
    %v2260 = vrcp.pop %v2259
    %v2261 = vmul.f32 1.0, %v2260
    %2262 = vmatprep.subr.mxu0 0.0
    %2263 = vmatpush1.msra.mxu0 0.0
    %2264 = vmatprep.subr.mxu0 0.0
    %2265 = vmatpush1.msra.mxu0 0.0
    %2266 = vmatprep.subr.mxu0 0.0
    %2267 = vmatpush1.msra.mxu0 0.0
    %2268 = vmatprep.subr.mxu0 0.0
    %2269 = vmatpush1.msra.mxu0 0.0
    %2270 = vmatprep.subr.mxu0 0.0
    %2271 = vmatpush1.msra.mxu0 0.0
    %2272 = vmatprep.subr.mxu0 0.0
    %2273 = vmatpush1.msra.mxu0 0.0
    %2274 = vmatprep.subr.mxu0 0.0
    %2275 = vmatpush1.msra.mxu0 0.0
    %2276 = vmatprep.subr.mxu0 0.0
    %2277 = vmatpush1.msra.mxu0 0.0
    %2278 = vmatprep.subr.mxu0 0.0
    %2279 = vmatpush1.msra.mxu0 0.0
    %2280 = vmatprep.subr.mxu0 0.0
    %2281 = vmatpush1.msra.mxu0 0.0
    %2282 = vmatprep.subr.mxu0 0.0
    %2283 = vmatpush1.msra.mxu0 0.0
    %2284 = vmatprep.subr.mxu0 0.0
    %2285 = vmatpush1.msra.mxu0 0.0
    %2286 = vmatprep.subr.mxu0 0.0
    %2287 = vmatpush1.msra.mxu0 %v457
    %2288 = vmatprep.subr.mxu0 0.0
    %2289 = vmatpush1.msra.mxu0 %v456
    %2290 = vmatprep.subr.mxu0 0.0
    %2291 = vmatpush1.msra.mxu0 %v455
    %2292 = vmatprep.subr.mxu0 0.0
    %2293 = vmatpush1.msra.mxu0 %v454
    %2294 = vmatprep.subr.mxu0 0.0
    %2295 = vmatpush2.msra.mxu0 0.0
    %2296 = vmatprep.subr.mxu0 0.0
    %2297 = vmatpush2.msra.mxu0 0.0
    %2298 = vmatprep.subr.mxu0 0.0
    %2299 = vmatpush2.msra.mxu0 0.0
    %2300 = vmatprep.subr.mxu0 0.0
    %2301 = vmatpush2.msra.mxu0 0.0
    %2302 = vmatprep.subr.mxu0 0.0
    %2303 = vmatpush2.msra.mxu0 0.0
    %2304 = vmatprep.subr.mxu0 0.0
    %2305 = vmatpush2.msra.mxu0 0.0
    %2306 = vmatprep.subr.mxu0 0.0
    %2307 = vmatpush2.msra.mxu0 0.0
    %2308 = vmatprep.subr.mxu0 0.0
    %2309 = vmatpush2.msra.mxu0 0.0
    %2310 = vmatprep.subr.mxu0 0.0
    %2311 = vmatpush2.msra.mxu0 0.0
    %2312 = vmatprep.subr.mxu0 0.0
    %2313 = vmatpush2.msra.mxu0 0.0
    %2314 = vmatprep.subr.mxu0 0.0
    %2315 = vmatpush2.msra.mxu0 0.0
    %2316 = vmatprep.subr.mxu0 0.0
    %2317 = vmatpush2.msra.mxu0 0.0
    %2318 = vmatprep.subr.mxu0 0.0
    %2319 = vmatpush2.msra.mxu0 0.0
    %2320 = vmatprep.subr.mxu0 0.0
    %2321 = vmatpush2.msra.mxu0 0.0
    %2322 = vmatprep.subr.mxu0 0.0
    %2323 = vmatpush2.msra.mxu0 0.0
    %2324 = vmatprep.subr.mxu0 0.0
    %2325 = vmatpush2.msra.mxu0 0.0
    %2326 = vmatprep.mubr.f32.mxu0 0.0
    %2327 = vmatmul.mubr.f32.gmra.mxu0 %v2106
    %v2328 = vpop.f32.mrf.mxu0
    %v2329 = vadd.f32 %v622, %v2328
    %v2330 = vpop.f32.mrf.mxu0
    %2331 = vdwg.mxu0
    %v2332 = vmul.f32 %v2184, %v2329
    %v2333 = vadd.f32 %v406, %v2332
    %v2334 = vtanh.pop %v2333
    %v2335 = vsub.f32 1.0, %v2261
    %v2336 = vmul.f32 %v2335, %v2334
    %v2337 = vmul.f32 %v2261, %v2104
    %v2338 = vadd.f32 %v2336, %v2337
    %v2339 = vld [vmem:[%s5] sm:$0xff]
    %v2340 = vld [vmem:[%s5 + $0x8] sm:$0xff]
    %v2341 = vld [vmem:[%s5 + $0x10] sm:$0xff]
    %v2342 = vld [vmem:[%s5 + $0x18] sm:$0xff]
    %v2343 = vld [vmem:[%s6] sm:$0x1]
    %v2345 = vlaneseq
    %v2346 = vshrl.u32 %v2345, 7
    %v2347 = vsub.s32 0, %v2346
    %v2348 = vrot.slane %v2343, %v2347
    %v2351 = vsel %vm460, %v2338, 0
    %2353 = vmatprep.subr.mxu0 0.0
    %2354 = vmatpush1.msra.mxu0 0.0
    %2355 = vmatprep.subr.mxu0 0.0
    %2356 = vmatpush1.msra.mxu0 0.0
    %2357 = vmatprep.subr.mxu0 0.0
    %2358 = vmatpush1.msra.mxu0 0.0
    %2359 = vmatprep.subr.mxu0 0.0
    %2360 = vmatpush1.msra.mxu0 0.0
    %2361 = vmatprep.subr.mxu0 0.0
    %2362 = vmatpush1.msra.mxu0 0.0
    %2363 = vmatprep.subr.mxu0 0.0
    %2364 = vmatpush1.msra.mxu0 0.0
    %2365 = vmatprep.subr.mxu0 0.0
    %2366 = vmatpush1.msra.mxu0 0.0
    %2367 = vmatprep.subr.mxu0 0.0
    %2368 = vmatpush1.msra.mxu0 0.0
    %2369 = vmatprep.subr.mxu0 0.0
    %2370 = vmatpush1.msra.mxu0 0.0
    %2371 = vmatprep.subr.mxu0 0.0
    %2372 = vmatpush1.msra.mxu0 0.0
    %2373 = vmatprep.subr.mxu0 0.0
    %2374 = vmatpush1.msra.mxu0 0.0
    %2375 = vmatprep.subr.mxu0 0.0
    %2376 = vmatpush1.msra.mxu0 0.0
    %2377 = vmatprep.subr.mxu0 0.0
    %2378 = vmatpush1.msra.mxu0 %v2342
    %2379 = vmatprep.subr.mxu0 0.0
    %2380 = vmatpush1.msra.mxu0 %v2341
    %2381 = vmatprep.subr.mxu0 0.0
    %2382 = vmatpush1.msra.mxu0 %v2340
    %2383 = vmatprep.subr.mxu0 0.0
    %2384 = vmatpush1.msra.mxu0 %v2339
    %2385 = vmatprep.subr.mxu0 0.0
    %2386 = vmatpush2.msra.mxu0 0.0
    %2387 = vmatprep.subr.mxu0 0.0
    %2388 = vmatpush2.msra.mxu0 0.0
    %2389 = vmatprep.subr.mxu0 0.0
    %2390 = vmatpush2.msra.mxu0 0.0
    %2391 = vmatprep.subr.mxu0 0.0
    %2392 = vmatpush2.msra.mxu0 0.0
    %2393 = vmatprep.subr.mxu0 0.0
    %2394 = vmatpush2.msra.mxu0 0.0
    %2395 = vmatprep.subr.mxu0 0.0
    %2396 = vmatpush2.msra.mxu0 0.0
    %2397 = vmatprep.subr.mxu0 0.0
    %2398 = vmatpush2.msra.mxu0 0.0
    %2399 = vmatprep.subr.mxu0 0.0
    %2400 = vmatpush2.msra.mxu0 0.0
    %2401 = vmatprep.subr.mxu0 0.0
    %2402 = vmatpush2.msra.mxu0 0.0
    %2403 = vmatprep.subr.mxu0 0.0
    %2404 = vmatpush2.msra.mxu0 0.0
    %2405 = vmatprep.subr.mxu0 0.0
    %2406 = vmatpush2.msra.mxu0 0.0
    %2407 = vmatprep.subr.mxu0 0.0
    %2408 = vmatpush2.msra.mxu0 0.0
    %2409 = vmatprep.subr.mxu0 0.0
    %2410 = vmatpush2.msra.mxu0 0.0
    %2411 = vmatprep.subr.mxu0 0.0
    %2412 = vmatpush2.msra.mxu0 0.0
    %2413 = vmatprep.subr.mxu0 0.0
    %2414 = vmatpush2.msra.mxu0 0.0
    %2415 = vmatprep.subr.mxu0 0.0
    %2416 = vmatpush2.msra.mxu0 0.0
    %2417 = vmatprep.mubr.f32.mxu0 0.0
    %2418 = vmatmul.mubr.f32.gmra.mxu0 %v2351
    %v2419 = vpop.f32.mrf.mxu0
    %v2420 = vadd.f32 %v2348, %v2419
    %v2421 = vpop.f32.mrf.mxu0
    %2422 = vdwg.mxu0
    %vm2423 = vcmask 130048
    %2424 = vst.msk [vmem:[#allocation2] sm:$0xff] %vm2423, %v2420
    // Predicated region
    $region30: #{tpu_custom_call.1} parent=1 // pred_check
      _
    $region31: #{tpu_custom_call.1} parent=1 // pred_check_branch
      %2426 = sbr.rel (0) target = $region33
    $region32: #{tpu_custom_call.1} parent=1 // pred_region
      %s2428 = ssub.s32 128, 128
      %2429 = vsyncadd [#allocation3], %s2428
      %s2431 = sshll.u32 [#allocation2], 4
      %s2432 = int_to_ptr.vmem [resolvable:$true] %s2431
      %2434 = dma.vmem_to_hbm [thread:$0]  %s2432, 128, %s7, [#allocation3]
    $region33: #{tpu_custom_call.1} parent=1 // pred_fallthru
      _
    // Predicated region
    $region34: #{tpu_custom_call.1} parent=1 // pred_check
      _
    $region35: #{tpu_custom_call.1} parent=1 // pred_check_branch
      %2436 = sbr.rel (0) target = $region37
    $region36: #{tpu_custom_call.1} parent=1 // pred_region
      %2437 = dma.done [#allocation3], 128
    $region37: #{tpu_custom_call.1} parent=1 // pred_fallthru
      _
    %2438 = vsyncpa [#allocation3], 1

</llo_original>
